<compile_context>
chip_gen: v7x
topology: tpu7x:2x2x1
jax: 0.10.0
libtpu: 0.0.40
codegen_flags: <defaults>
</compile_context>

<pallas_src>
import functools

import jax
import jax.numpy as jnp
from jax import lax
from jax.experimental import pallas as pl
from jax.experimental.pallas import tpu as pltpu

EPS = 1e-12  # matches AdaAttN.__init__ default


# --------------------------------------------------------------------------
# Kernel
# --------------------------------------------------------------------------
def _adaattn_kernel(rc_ref, mur_ref, rs_ref, q_ref, k_ref, vs_ref, fc_ref,
                    out_ref, acc_ref):
    """One (batch b, content tile i, style chunk ks) grid step.

      rc_ref  : (Cv, 1)        f32   1/(std+eps) per content channel
      mur_ref : (Cv, 1)        f32   mean/(std+eps) per content channel
      rs_ref  : (2Cv, 1)       f32   rowsum(0.5*[V; V*V]) over full style axis
      q_ref   : (Cqk, tile_n)  bf16  projected+normalized content queries
      k_ref   : (Cqk, tile_s)  bf16  0.5 * projected+normalized style keys
      vs_ref  : (2Cv, tile_s)  f32   0.5 * [V; V*V]
      fc_ref  : (Cv, tile_n)   f32   raw content features (norm target)
      acc_ref : (2Cv, tile_n)  f32   accumulator for (0.5*Vs) @ tanh(S/2)
    """
    cv = out_ref.shape[0]
    ks = pl.program_id(2)

    @pl.when(ks == 0)
    def _():
        acc_ref[...] = jnp.zeros_like(acc_ref)

    # Half-logits S/2 = (0.5*K)^T Q : bf16 operands, f32 accumulation on MXU.
    s_half = lax.dot_general(k_ref[...], q_ref[...], (((0,), (0,)), ((), ())),
                             preferred_element_type=jnp.float32)  # (tile_s, tile_n)

    # Sigmoid fold: Vs @ sigmoid(S) == (0.5*Vs) @ tanh(S/2) + rowsum(0.5*Vs).
    # Only tanh touches the score slab (EUP); value matmul stays f32 (MXU).
    acc_ref[...] += jnp.dot(vs_ref[...], jnp.tanh(s_half),
                            preferred_element_type=jnp.float32)   # (2Cv, tile_n)

    @pl.when(ks == pl.num_programs(2) - 1)
    def _():
        mv = acc_ref[...] + rs_ref[...]        # completes the sigmoid fold
        m, e2 = mv[:cv], mv[cv:]               # M and E_A[V^2]
        std = jnp.sqrt(jnp.maximum(e2 - m * m, 0.0) + 1e-8)
        nfc = fc_ref[...] * rc_ref[...] - mur_ref[...]   # channel-norm of F_c
        out_ref[...] = std * nfc + m


# --------------------------------------------------------------------------
# Channel statistics / projections (plain JAX, cheap O(N*C^2) work)
# --------------------------------------------------------------------------
def _channel_stats(x, eps=EPS):
    """Per-channel mean and 1/(std+eps), reduced over (batch, H, W).

    Matches the module's norm(): torch.mean/std over dims [0,1,2] of each
    (B, H, W) channel slice, unbiased std, eps added to the std.
    """
    mean = jnp.mean(x, axis=(0, 2, 3))
    n = x.shape[0] * x.shape[2] * x.shape[3]
    var = jnp.sum((x - mean[None, :, None, None]) ** 2, axis=(0, 2, 3)) / (n - 1)
    return mean, 1.0 / (jnp.sqrt(var) + eps)


def channel_norm(x, eps=EPS):
    mean, rstd = _channel_stats(x, eps)
    return (x - mean[None, :, None, None]) * rstd[None, :, None, None]


def _project(params, F_c, F_s, F_c_prev, F_s_prev):
    """Precompute the kernel operands (1x1 convs with channel norm folded in)."""
    B, Cv = F_c.shape[:2]
    Cqk = F_c_prev.shape[1]
    Nc = F_c.shape[2] * F_c.shape[3]
    Ns = F_s.shape[2] * F_s.shape[3]

    mu_cp, r_cp = _channel_stats(F_c_prev)
    mu_sp, r_sp = _channel_stats(F_s_prev)
    mu_c, r_c = _channel_stats(F_c)

    wf, bf = params["wf"], params["bf"]
    wg, bg = params["wg"], params["bg"]
    wh, bh = params["wh"], params["bh"]

    fcp = F_c_prev.reshape(B, Cqk, Nc)
    fsp = F_s_prev.reshape(B, Cqk, Ns)
    fs = F_s.reshape(B, Cv, Ns)
    fc = F_c.reshape(B, Cv, Nc)

    # Fold the channel norm into the 1x1-conv weights/biases (exact algebra).
    wf_eff = wf * r_cp[None, :]
    bf_eff = bf - wf @ (mu_cp * r_cp)
    wg_eff = wg * r_sp[None, :]
    bg_eff = bg - wg @ (mu_sp * r_sp)

    # Q, K in bf16 (MXU-native score matmul); K carries one 0.5 of the sigmoid
    # fold, Vs carries the other 0.5; rs is the affine remainder of the fold.
    q = (jnp.einsum('oi,bin->bon', wf_eff, fcp)
         + bf_eff[None, :, None]).astype(jnp.bfloat16)
    k_half = (0.5 * (jnp.einsum('oi,bin->bon', wg_eff, fsp)
                     + bg_eff[None, :, None])).astype(jnp.bfloat16)
    v = jnp.einsum('oi,bin->bon', wh, fs) + bh[None, :, None]
    vs_half = 0.5 * jnp.concatenate([v, v * v], axis=1)          # (B, 2Cv, Ns)
    rs = jnp.sum(vs_half, axis=2, keepdims=True)                 # (B, 2Cv, 1)

    rc_col = r_c.reshape(Cv, 1)
    mur_col = (mu_c * r_c).reshape(Cv, 1)
    return q, k_half, vs_half, rs, rc_col, mur_col, fc


# --------------------------------------------------------------------------
# Wrapper
# --------------------------------------------------------------------------
@functools.partial(jax.jit, static_argnames=("tile_n", "tile_s"))
def adaattn_forward(params, F_c, F_s, F_c_prev, F_s_prev, *,
                    tile_n=512, tile_s=1024):
    B, Cv, Hc, Wc = F_c.shape
    _, _, Hs, Ws = F_s.shape
    Cqk = F_c_prev.shape[1]
    Nc, Ns = Hc * Wc, Hs * Ws

    tile_n = min(tile_n, Nc)
    tile_s = min(tile_s, Ns)
    assert Nc % tile_n == 0 and tile_n % 128 == 0, (Nc, tile_n)
    assert Ns % tile_s == 0 and tile_s % 128 == 0, (Ns, tile_s)
    # TODO(synk): pad Cqk/Cv to multiples of 8 instead of asserting, to support
    # arbitrary channel counts without sublane-misaligned slices.
    assert Cqk % 8 == 0 and Cv % 8 == 0, (Cqk, Cv)
    n_tiles, ns_tiles = Nc // tile_n, Ns // tile_s

    q, k_half, vs_half, rs, rc_col, mur_col, fc = _project(
        params, F_c, F_s, F_c_prev, F_s_prev)

    const = lambda shape: pl.BlockSpec(shape, lambda b, i, s: (0,) * len(shape))
    per_batch = lambda C: pl.BlockSpec((pl.Squeezed(), C, 1),
                                       lambda b, i, s: (b, 0, 0))
    per_ctile = lambda C: pl.BlockSpec((pl.Squeezed(), C, tile_n),
                                       lambda b, i, s: (b, 0, i))
    per_stile = lambda C: pl.BlockSpec((pl.Squeezed(), C, tile_s),
                                       lambda b, i, s: (b, 0, s))

    # Advisory cost for XLA's scheduler: score + value matmuls, one tanh per
    # score, streamed bytes (style side is re-streamed once per content tile
    # when it does not fit VMEM in one chunk).
    style_passes = n_tiles if ns_tiles > 1 else 1
    flops = 2 * B * Nc * Ns * (Cqk + 2 * Cv)
    bytes_accessed = int(
        q.size * 2 + fc.size * 4 + B * Cv * Nc * 4 + rs.size * 4
        + style_passes * (k_half.size * 2 + vs_half.size * 4))

    return pl.pallas_call(
        _adaattn_kernel,
        out_shape=jax.ShapeDtypeStruct((B, Cv, Nc), jnp.float32),
        grid_spec=pltpu.PrefetchScalarGridSpec(
            num_scalar_prefetch=0,
            grid=(B, n_tiles, ns_tiles),
            in_specs=[
                const((Cv, 1)),          # 1/(std+eps) of F_c channels
                const((Cv, 1)),          # mean * rstd of F_c channels
                per_batch(2 * Cv),       # rs = rowsum(0.5*[V; V*V])
                per_ctile(Cqk),          # Q tile          (bf16)
                per_stile(Cqk),          # 0.5*K chunk     (bf16)
                per_stile(2 * Cv),       # 0.5*[V;V*V]     (f32)
                per_ctile(Cv),           # raw F_c tile    (norm target)
            ],
            out_specs=per_ctile(Cv),
            scratch_shapes=[pltpu.VMEM((2 * Cv, tile_n), jnp.float32)],
        ),
        compiler_params=pltpu.CompilerParams(
            dimension_semantics=("parallel", "parallel", "arbitrary"),
            vmem_limit_bytes=64 * 1024 * 1024),
        cost_estimate=pl.CostEstimate(
            flops=int(flops),
            transcendentals=int(B * Nc * Ns),
            bytes_accessed=bytes_accessed),
    )(rc_col, mur_col, rs, q, k_half, vs_half, fc)


# --------------------------------------------------------------------------
# References (plain JAX)
# --------------------------------------------------------------------------
def attention_reference(Q, K, V, nfc):
    """The torch module's attention math, given already-projected Q, K, V and
    channel-normalized content features (all flattened to (B, C, N), f32)."""
    A = jax.nn.sigmoid(jnp.einsum('bcq,bcs->bqs', Q, K))
    A_T = jnp.swapaxes(A, 1, 2)
    M = jnp.einsum('bcs,bsq->bcq', V, A_T)
    var = jnp.einsum('bcs,bsq->bcq', V * V, A_T) - M * M
    S = jnp.sqrt(jnp.maximum(var, 0.0) + 1e-8)
    return S * nfc + M


def reference_forward(params, F_c, F_s, F_c_prev, F_s_prev):
    """Pure-f32 JAX reference mirroring the PyTorch module."""
    B, Cv = F_c.shape[:2]
    Cqk = F_c_prev.shape[1]
    Q = jnp.einsum('oi,bin->bon', params["wf"],
                   channel_norm(F_c_prev).reshape(B, Cqk, -1)) + params["bf"][None, :, None]
    K = jnp.einsum('oi,bin->bon', params["wg"],
                   channel_norm(F_s_prev).reshape(B, Cqk, -1)) + params["bg"][None, :, None]
    V = jnp.einsum('oi,bin->bon', params["wh"],
                   F_s.reshape(B, Cv, -1)) + params["bh"][None, :, None]
    return attention_reference(Q, K, V, channel_norm(F_c).reshape(B, Cv, -1))


# --------------------------------------------------------------------------
if __name__ == "__main__":
    key = jax.random.PRNGKey(0)
    ks = jax.random.split(key, 10)

    B, Cqk, Cv = 2, 16, 16
    Hc, Wc, Hs, Ws = 32, 32, 16, 8   # content Nc=1024 (2 tiles of 512), style Ns=128

    F_c = jax.random.normal(ks[0], (B, Cv, Hc, Wc), jnp.float32)
    F_s = jax.random.normal(ks[1], (B, Cv, Hs, Ws), jnp.float32)
    F_c_prev = jax.random.normal(ks[2], (B, Cqk, Hc, Wc), jnp.float32)
    F_s_prev = jax.random.normal(ks[3], (B, Cqk, Hs, Ws), jnp.float32)

    # Deterministic synthetic parameters (Conv2d 1x1 -> (out, in) weight + bias).
    params = {
        "wf": 0.1 * jax.random.normal(ks[4], (Cqk, Cqk), jnp.float32),
        "bf": 0.1 * jax.random.normal(ks[5], (Cqk,), jnp.float32),
        "wg": 0.1 * jax.random.normal(ks[6], (Cqk, Cqk), jnp.float32),
        "bg": 0.1 * jax.random.normal(ks[7], (Cqk,), jnp.float32),
        "wh": 0.1 * jax.random.normal(ks[8], (Cv, Cv), jnp.float32),
        "bh": 0.1 * jax.random.normal(ks[9], (Cv,), jnp.float32),
    }

    out = adaattn_forward(params, F_c, F_s, F_c_prev, F_s_prev)
    jax.block_until_ready(out)
    assert out.shape == (B, Cv, Hc * Wc), out.shape
    assert bool(jnp.isfinite(out).all())

    # Check 1 (tight): kernel tiling / accumulation / sigmoid-fold algebra vs.
    # the module math evaluated on the *same* operands the kernel consumes
    # (bf16 Q/K logits, f32 values).  Differences here are pure f32
    # reduction-order noise.
    q_bf, k_half_bf, vs_half, _, _, _, _ = _project(
        params, F_c, F_s, F_c_prev, F_s_prev)
    Q_same = q_bf.astype(jnp.float32)
    K_same = k_half_bf.astype(jnp.float32) * 2.0        # 0.5-fold is exact in bf16
    V_same = 2.0 * vs_half[:, :Cv, :]
    ref_same_prec = attention_reference(Q_same, K_same, V_same,
                                        channel_norm(F_c).reshape(B, Cv, -1))
    err1 = float(jnp.max(jnp.abs(out - ref_same_prec)))
    assert jnp.allclose(out, ref_same_prec, atol=2e-2, rtol=2e-2), err1

    # Check 2 (robust): fidelity to the pure-f32 module semantics.  Elementwise
    # diffs stem only from the bf16 score logits; the module's clamp+sqrt of
    # E[V^2]-M^2 can amplify them on isolated near-zero-variance elements, so
    # use a mean metric (any real bug would blow this up by orders of
    # magnitude).
    ref_f32 = reference_forward(params, F_c, F_s, F_c_prev, F_s_prev)
    mean_err = float(jnp.mean(jnp.abs(out - ref_f32)))
    assert mean_err < 1e-2, mean_err

    print("KERNEL_OK")
</pallas_src>

<mosaic_0001>
module attributes {stable_mosaic.version = 11 : i64} {
  func.func @_adaattn_kernel(%arg0: i32, %arg1: i32, %arg2: i32, %arg3: memref<16x1xf32, #tpu.memory_space<vmem>>, %arg4: memref<16x1xf32, #tpu.memory_space<vmem>>, %arg5: memref<1x32x1xf32, #tpu.memory_space<vmem>>, %arg6: memref<1x16x512xbf16, #tpu.memory_space<vmem>>, %arg7: memref<1x16x128xbf16, #tpu.memory_space<vmem>>, %arg8: memref<1x32x128xf32, #tpu.memory_space<vmem>>, %arg9: memref<1x16x512xf32, #tpu.memory_space<vmem>>, %arg10: memref<1x16x512xf32, #tpu.memory_space<vmem>>, %arg11: memref<32x512xf32, #tpu.memory_space<vmem>>) attributes {dimension_semantics = [#tpu.dimension_semantics<parallel>, #tpu.dimension_semantics<parallel>, #tpu.dimension_semantics<arbitrary>], iteration_bounds = array<i64: 2, 2, 1>, scalar_prefetch = 0 : i64, scratch_operands = 1 : i64, tpu.core_type = #tpu.core_type<tc>, window_params = [{pipeline_mode = #tpu.pipeline_mode<synchronous>, transform_indices = @transform_0, window_bounds = array<i64: 16, 1>}, {pipeline_mode = #tpu.pipeline_mode<synchronous>, transform_indices = @transform_1, window_bounds = array<i64: 16, 1>}, {transform_indices = @transform_2, window_bounds = array<i64: 1, 32, 1>}, {transform_indices = @transform_3, window_bounds = array<i64: 1, 16, 512>}, {transform_indices = @transform_4, window_bounds = array<i64: 1, 16, 128>}, {transform_indices = @transform_5, window_bounds = array<i64: 1, 32, 128>}, {transform_indices = @transform_6, window_bounds = array<i64: 1, 16, 512>}, {transform_indices = @transform_7, window_bounds = array<i64: 1, 16, 512>}]} {
    %c0_i32 = arith.constant 0 : i32
    %0 = arith.cmpi eq, %arg2, %c0_i32 : i32
    %1 = arith.extui %0 : i1 to i32
    %c0_i32_0 = arith.constant 0 : i32
    %2 = arith.cmpi ne, %1, %c0_i32_0 : i32
    scf.if %2 {
      %cst_16 = arith.constant 0.000000e+00 : f32
      %18 = vector.broadcast %cst_16 : f32 to vector<32x512xf32>
      %c0_17 = arith.constant 0 : index
      %c0_18 = arith.constant 0 : index
      %19 = vector.load %arg11[%c0_17, %c0_18] : memref<32x512xf32, #tpu.memory_space<vmem>>, vector<32x512xf32>
      tpu.vector_store %arg11[%c0_17, %c0_18], %18 {strides = array<i32>} : memref<32x512xf32, #tpu.memory_space<vmem>>, vector<32x512xf32>,
    } else {
    }
    %c0 = arith.constant 0 : index
    %c0_1 = arith.constant 0 : index
    %c0_2 = arith.constant 0 : index
    %3 = vector.load %arg7[%c0, %c0_1, %c0_2] : memref<1x16x128xbf16, #tpu.memory_space<vmem>>, vector<1x16x128xbf16>
    %4 = vector.shape_cast %3 : vector<1x16x128xbf16> to vector<16x128xbf16>
    %c0_3 = arith.constant 0 : index
    %c0_4 = arith.constant 0 : index
    %c0_5 = arith.constant 0 : index
    %5 = vector.load %arg6[%c0_3, %c0_4, %c0_5] : memref<1x16x512xbf16, #tpu.memory_space<vmem>>, vector<1x16x512xbf16>
    %6 = vector.shape_cast %5 : vector<1x16x512xbf16> to vector<16x512xbf16>
    %cst = arith.constant dense<0.000000e+00> : vector<128x512xf32>
    %7 = tpu.matmul %4, %6, %cst {dimension_numbers = #tpu.dot_dimension_numbers<[0], [0], [1], [1], [0, 1, 1, 1], [], []>} : vector<16x128xbf16>, vector<16x512xbf16>, vector<128x512xf32> -> vector<128x512xf32>
    %c0_6 = arith.constant 0 : index
    %c0_7 = arith.constant 0 : index
    %8 = vector.load %arg11[%c0_6, %c0_7] : memref<32x512xf32, #tpu.memory_space<vmem>>, vector<32x512xf32>
    %c0_8 = arith.constant 0 : index
    %c0_9 = arith.constant 0 : index
    %c0_10 = arith.constant 0 : index
    %9 = vector.load %arg8[%c0_8, %c0_9, %c0_10] : memref<1x32x128xf32, #tpu.memory_space<vmem>>, vector<1x32x128xf32>
    %10 = vector.shape_cast %9 : vector<1x32x128xf32> to vector<32x128xf32>
    %11 = math.tanh %7 : vector<128x512xf32>
    %cst_11 = arith.constant dense<0.000000e+00> : vector<32x512xf32>
    %12 = tpu.matmul %10, %11, %cst_11 {dimension_numbers = #tpu.dot_dimension_numbers<[1], [0], [0], [1], [0, 0, 1, 1], [], []>} : vector<32x128xf32>, vector<128x512xf32>, vector<32x512xf32> -> vector<32x512xf32>
    %13 = arith.addf %8, %12 : vector<32x512xf32>
    %c0_12 = arith.constant 0 : index
    %c0_13 = arith.constant 0 : index
    %14 = vector.load %arg11[%c0_12, %c0_13] : memref<32x512xf32, #tpu.memory_space<vmem>>, vector<32x512xf32>
    tpu.vector_store %arg11[%c0_12, %c0_13], %13 {strides = array<i32>} : memref<32x512xf32, #tpu.memory_space<vmem>>, vector<32x512xf32>,
    %c0_i32_14 = arith.constant 0 : i32
    %15 = arith.cmpi eq, %arg2, %c0_i32_14 : i32
    %16 = arith.extui %15 : i1 to i32
    %c0_i32_15 = arith.constant 0 : i32
    %17 = arith.cmpi ne, %16, %c0_i32_15 : i32
    scf.if %17 {
      %c0_16 = arith.constant 0 : index
      %c0_17 = arith.constant 0 : index
      %18 = vector.load %arg11[%c0_16, %c0_17] : memref<32x512xf32, #tpu.memory_space<vmem>>, vector<32x512xf32>
      %c0_18 = arith.constant 0 : index
      %c0_19 = arith.constant 0 : index
      %c0_20 = arith.constant 0 : index
      %19 = vector.load %arg5[%c0_18, %c0_19, %c0_20] : memref<1x32x1xf32, #tpu.memory_space<vmem>>, vector<1x32x1xf32>
      %20 = vector.shape_cast %19 : vector<1x32x1xf32> to vector<32x1xf32>
      %21 = vector.broadcast %20 : vector<32x1xf32> to vector<32x512xf32>
      %22 = arith.addf %18, %21 : vector<32x512xf32>
      %23 = vector.extract_strided_slice %22 {offsets = [0, 0], sizes = [16, 512], strides = [1, 1]} : vector<32x512xf32> to vector<16x512xf32>
      %24 = vector.extract_strided_slice %22 {offsets = [16, 0], sizes = [16, 512], strides = [1, 1]} : vector<32x512xf32> to vector<16x512xf32>
      %25 = arith.mulf %23, %23 : vector<16x512xf32>
      %26 = arith.subf %24, %25 : vector<16x512xf32>
      %cst_21 = arith.constant 0.000000e+00 : f32
      %27 = vector.broadcast %cst_21 : f32 to vector<16x512xf32>
      %28 = arith.maximumf %26, %27 : vector<16x512xf32>
      %cst_22 = arith.constant 9.99999993E-9 : f32
      %29 = vector.broadcast %cst_22 : f32 to vector<16x512xf32>
      %30 = arith.addf %28, %29 : vector<16x512xf32>
      %31 = math.sqrt %30 : vector<16x512xf32>
      %c0_23 = arith.constant 0 : index
      %c0_24 = arith.constant 0 : index
      %c0_25 = arith.constant 0 : index
      %32 = vector.load %arg9[%c0_23, %c0_24, %c0_25] : memref<1x16x512xf32, #tpu.memory_space<vmem>>, vector<1x16x512xf32>
      %33 = vector.shape_cast %32 : vector<1x16x512xf32> to vector<16x512xf32>
      %c0_26 = arith.constant 0 : index
      %c0_27 = arith.constant 0 : index
      %34 = vector.load %arg3[%c0_26, %c0_27] : memref<16x1xf32, #tpu.memory_space<vmem>>, vector<16x1xf32>
      %35 = vector.broadcast %34 : vector<16x1xf32> to vector<16x512xf32>
      %36 = arith.mulf %33, %35 : vector<16x512xf32>
      %c0_28 = arith.constant 0 : index
      %c0_29 = arith.constant 0 : index
      %37 = vector.load %arg4[%c0_28, %c0_29] : memref<16x1xf32, #tpu.memory_space<vmem>>, vector<16x1xf32>
      %38 = vector.broadcast %37 : vector<16x1xf32> to vector<16x512xf32>
      %39 = arith.subf %36, %38 : vector<16x512xf32>
      %40 = arith.mulf %31, %39 : vector<16x512xf32>
      %41 = arith.addf %40, %23 : vector<16x512xf32>
      %c0_30 = arith.constant 0 : index
      %c0_31 = arith.constant 0 : index
      %c0_32 = arith.constant 0 : index
      %42 = vector.load %arg10[%c0_30, %c0_31, %c0_32] : memref<1x16x512xf32, #tpu.memory_space<vmem>>, vector<1x16x512xf32>
      %43 = vector.shape_cast %42 : vector<1x16x512xf32> to vector<16x512xf32>
      %44 = vector.shape_cast %41 : vector<16x512xf32> to vector<1x16x512xf32>
      tpu.vector_store %arg10[%c0_30, %c0_31, %c0_32], %44 {strides = array<i32>} : memref<1x16x512xf32, #tpu.memory_space<vmem>>, vector<1x16x512xf32>,
    } else {
    }
    return
  }
  func.func @transform_0(%arg0: i32, %arg1: i32, %arg2: i32) -> (i32, i32) {
    %c0_i32 = arith.constant 0 : i32
    %c0_i32_0 = arith.constant 0 : i32
    %c0_i32_1 = arith.constant 0 : i32
    return %c0_i32, %c0_i32_0 : i32, i32
  }
  func.func @transform_1(%arg0: i32, %arg1: i32, %arg2: i32) -> (i32, i32) {
    %c0_i32 = arith.constant 0 : i32
    %c0_i32_0 = arith.constant 0 : i32
    %c0_i32_1 = arith.constant 0 : i32
    return %c0_i32, %c0_i32_0 : i32, i32
  }
  func.func @transform_2(%arg0: i32, %arg1: i32, %arg2: i32) -> (i32, i32, i32) {
    %c0_i32 = arith.constant 0 : i32
    %c0_i32_0 = arith.constant 0 : i32
    %c0_i32_1 = arith.constant 0 : i32
    return %arg0, %c0_i32, %c0_i32_0 : i32, i32, i32
  }
  func.func @transform_3(%arg0: i32, %arg1: i32, %arg2: i32) -> (i32, i32, i32) {
    %c0_i32 = arith.constant 0 : i32
    %c0_i32_0 = arith.constant 0 : i32
    return %arg0, %c0_i32, %arg1 : i32, i32, i32
  }
  func.func @transform_4(%arg0: i32, %arg1: i32, %arg2: i32) -> (i32, i32, i32) {
    %c0_i32 = arith.constant 0 : i32
    %c0_i32_0 = arith.constant 0 : i32
    return %arg0, %c0_i32, %arg2 : i32, i32, i32
  }
  func.func @transform_5(%arg0: i32, %arg1: i32, %arg2: i32) -> (i32, i32, i32) {
    %c0_i32 = arith.constant 0 : i32
    %c0_i32_0 = arith.constant 0 : i32
    return %arg0, %c0_i32, %arg2 : i32, i32, i32
  }
  func.func @transform_6(%arg0: i32, %arg1: i32, %arg2: i32) -> (i32, i32, i32) {
    %c0_i32 = arith.constant 0 : i32
    %c0_i32_0 = arith.constant 0 : i32
    return %arg0, %c0_i32, %arg1 : i32, i32, i32
  }
  func.func @transform_7(%arg0: i32, %arg1: i32, %arg2: i32) -> (i32, i32, i32) {
    %c0_i32 = arith.constant 0 : i32
    %c0_i32_0 = arith.constant 0 : i32
    return %arg0, %c0_i32, %arg1 : i32, i32, i32
  }
}

</mosaic_0001>

<llo_original>
// kernel: sub.27
$region0: #{sub.27}
  #allocation0 [shape = 's32[1]{0}', space=sflag, size = 0x4, scoped, tag = 'scoped memory for sub.27']
  %s0 = inlined_call_operand.vmem [shape: f32[16], index: 0, kind: input, shape index: {}]
  %s1 = inlined_call_operand.vmem [shape: f32[16], index: 1, kind: input, shape index: {}]
  %s2 = inlined_call_operand.vmem [shape: f32[16], index: 2, kind: output, shape index: {}]
  %v3 = vld [vmem:[%s0] sm:$0x1]
  %v4 = vld [vmem:[%s1] sm:$0x1]
  %5 = xla_tuple %v3, %v4
  %6 = xla_tuple %5
  %v7 = vsub.f32 %v3, %v4
  %8 = xla_tuple %v7
  %9 = vst [vmem:[%s2] sm:$0x1] %v7

// kernel: adaattn_forward.1
$region0: #{adaattn_forward.1}
  #allocation0 [shape = 'u32[]', space=smem, size = 0x4, offset = 0x4, fixed_abs, tag = 'smem constant byte address 0x4 - core index']
  #allocation1 [shape = 'u32[144,128]{1,0:T(1,128)}', space=vmem, size = 0x12000, scoped, tag = 'internal scratch']
  #allocation2 [shape = 'f32[32,512]{1,0:T(8,128)}', space=vmem, size = 0x10000, scoped, tag = 'scratch operand']
  %s0 = inlined_call_operand.hbm [shape: f32[16,1], index: 0, kind: input, shape index: {}]
  %s1 = inlined_call_operand.hbm [shape: f32[16,1], index: 1, kind: input, shape index: {}]
  %s2 = inlined_call_operand.hbm [shape: f32[2,32,1], index: 2, kind: input, shape index: {}]
  %s3 = inlined_call_operand.hbm [shape: bf16[2,16,1024], index: 3, kind: input, shape index: {}]
  %s4 = inlined_call_operand.hbm [shape: bf16[2,16,128], index: 4, kind: input, shape index: {}]
  %s5 = inlined_call_operand.hbm [shape: f32[2,32,128], index: 5, kind: input, shape index: {}]
  %s6 = inlined_call_operand.hbm [shape: f32[2,16,1024], index: 6, kind: input, shape index: {}]
  %s7 = inlined_call_operand.hbm [shape: f32[2,16,1024], index: 7, kind: output, shape index: {}]
  %s8 = sld [smem:[#allocation0]]
  $region97: #{adaattn_forward.1} parent=0
    _
  %s10 = ssub.s32 1, %s8
  %s11 = scalar_select 0, %s10, %s8
  $region1: #{adaattn_forward.1} parent=0
    #allocation3 [shape = 'u8[8192]{0}', space=vmem, size = 0x2000, scoped, tag = 'input window, operand 0, single buffered']
    #allocation4 [shape = 's32[2]{0}', space=sflag, size = 0x8, scoped, tag = 'scoped memory for adaattn_forward.1']
    #allocation5 [shape = 's32[2]{0}', space=sflag, size = 0x8, scoped, tag = 'scoped memory for adaattn_forward.1']
    #allocation6 [shape = 'u8[8192]{0}', space=vmem, size = 0x2000, scoped, tag = 'input window, operand 1, single buffered']
    #allocation7 [shape = 's32[1]{0}', space=sflag, size = 0x4, scoped, tag = 'scoped memory for adaattn_forward.1']
    #allocation8 [shape = 'u8[32768]{0}', space=vmem, size = 0x8000, scoped, tag = 'input window, operand 2']
    #allocation9 [shape = 'u8[32768]{0}', space=vmem, size = 0x8000, scoped, tag = 'input window, operand 3']
    #allocation10 [shape = 'u8[8192]{0}', space=vmem, size = 0x2000, scoped, tag = 'input window, operand 4']
    #allocation11 [shape = 'u8[32768]{0}', space=vmem, size = 0x8000, scoped, tag = 'input window, operand 5']
    #allocation12 [shape = 'u8[65536]{0}', space=vmem, size = 0x10000, scoped, tag = 'input window, operand 6']
    #allocation13 [shape = 'u8[65536]{0}', space=vmem, size = 0x10000, scoped, tag = 'output window, operand 0']
    %12 = vsyncpa [#allocation4], 0
    %13 = vsyncpa [#allocation7], 0
    %14 = vsyncpa [#allocation5], 0
    %s15 = scalar_lea.sflag [#allocation5], 1
    %16 = vsyncpa %s15, 0
    loop: start=0, step=1, limit=6
    $region2: #{adaattn_forward.1} parent=1 // loop_pre_header
      _
    $region3: #{adaattn_forward.1} parent=1 // loop_header
      %s18 = sphi 0, %s22
      %p19 = scmp.ge.s32.totalorder %s18, 6
      %s25 = sphi 0, %s44
      %s26 = sphi 0, %s40
      %s27 = sphi 0, %s36
      %s28 = sphi 0, %s25
      %s29 = sphi 0, %s26
      %s30 = sphi 0, %s27
      %s31 = sphi 0, %s28
      %s32 = sphi 0, %s29
      %s33 = sphi 0, %s30
      %s45 = sphi 0, %s45
      %s47 = sphi 0, %s45
      %s48 = sphi 0, %s47
      %s62 = sphi 0, %s48
      %s66 = sphi 0, %s66
      %s68 = sphi 0, %s66
      %s69 = sphi 0, %s68
      %s83 = sphi 0, %s69
      %s89 = sphi 0, %s91
      %s92 = sphi 0, %s89
      %s93 = sphi 0, %s92
      %s109 = sphi 0, %s93
      %s117 = sphi 0, %s119
      %s120 = sphi 0, %s117
      %s121 = sphi 0, %s120
      %s137 = sphi 0, %s121
      %s145 = sphi 0, %s147
      %s148 = sphi 0, %s145
      %s149 = sphi 0, %s148
      %s165 = sphi 0, %s149
      %s173 = sphi 0, %s175
      %s176 = sphi 0, %s173
      %s177 = sphi 0, %s176
      %s193 = sphi 0, %s177
      %s201 = sphi 0, %s203
      %s204 = sphi 0, %s201
      %s205 = sphi 0, %s204
      %s221 = sphi 0, %s205
      %s229 = sphi 0, %s231
      %s232 = sphi 0, %s229
      %s233 = sphi 0, %s232
      %s249 = sphi 0, %s233
    $region4: #{adaattn_forward.1} parent=1 // loop_header_branch
      %21 = sbr.rel (%p19) target = $region8
    $region5: #{adaattn_forward.1} parent=1 // loop_body
      %s23 = ssub.s32 %s18, 1
      %s24 = ssub.s32 %s18, 2
      %s34 = sadd.s32 1, %s27
      %p35 = scmp.ge.s32.totalorder %s34, 1
      %s36 = scalar_select %p35, 0, %s34
      %s37 = sadd.s32 1, %s26
      %s38 = scalar_select %p35, %s37, %s26
      %p39 = scmp.ge.s32.totalorder %s38, 2
      %s40 = scalar_select %p39, 0, %s38
      %s41 = sadd.s32 1, %s25
      %s42 = scalar_select %p39, %s41, %s25
      %p43 = scmp.ge.s32.totalorder %s42, 2
      %s44 = scalar_select %p43, 0, %s42
      %s46 = sadd.s32 %s45, 1
      %p49 = scmp.eq.s32.totalorder %s18, 3
      %p50 = scmp.ne.s32.totalorder %s45, %s47
      %p51 = scmp.eq.s32.totalorder %s18, 0
      %p52 = por %p50, %p51
      %p53 = scmp.ne.s32.totalorder %s45, %s47
      %p54 = scmp.eq.s32.totalorder %s23, 3
      %p55 = por %p53, %p54
      %p56 = scmp.ne.s32.totalorder %s47, %s48
      %p57 = scmp.eq.s32.totalorder %s23, 0
      %p58 = por %p56, %p57
      %p59 = scmp.ne.s32.totalorder %s47, %s48
      %p60 = scmp.eq.s32.totalorder %s24, 3
      %p61 = por %p59, %p60
      %p63 = scmp.ne.s32.totalorder %s48, %s62
      %p64 = scmp.eq.s32.totalorder %s24, 0
      %p65 = por %p63, %p64
      %s67 = sadd.s32 %s66, 1
      %p70 = scmp.eq.s32.totalorder %s18, 3
      %p71 = scmp.ne.s32.totalorder %s66, %s68
      %p72 = scmp.eq.s32.totalorder %s18, 0
      %p73 = por %p71, %p72
      %p74 = scmp.ne.s32.totalorder %s66, %s68
      %p75 = scmp.eq.s32.totalorder %s23, 3
      %p76 = por %p74, %p75
      %p77 = scmp.ne.s32.totalorder %s68, %s69
      %p78 = scmp.eq.s32.totalorder %s23, 0
      %p79 = por %p77, %p78
      %p80 = scmp.ne.s32.totalorder %s68, %s69
      %p81 = scmp.eq.s32.totalorder %s24, 3
      %p82 = por %p80, %p81
      %p84 = scmp.ne.s32.totalorder %s69, %s83
      %p85 = scmp.eq.s32.totalorder %s24, 0
      %p86 = por %p84, %p85
      %s87 = ssub.s32 %s25, %s44
      %p88 = scmp.eq.s32.totalorder %s87, 0
      %s90 = sadd.s32 %s89, 1
      %s91 = scalar_select %p88, %s89, %s90
      %p94 = pneg %p88
      %p95 = scmp.eq.s32.totalorder %s18, 3
      %p96 = por %p94, %p95
      %p97 = scmp.ne.s32.totalorder %s89, %s92
      %p98 = scmp.eq.s32.totalorder %s18, 0
      %p99 = por %p97, %p98
      %p100 = scmp.ne.s32.totalorder %s89, %s92
      %p101 = scmp.eq.s32.totalorder %s23, 3
      %p102 = por %p100, %p101
      %p103 = scmp.ne.s32.totalorder %s92, %s93
      %p104 = scmp.eq.s32.totalorder %s23, 0
      %p105 = por %p103, %p104
      %p106 = scmp.ne.s32.totalorder %s92, %s93
      %p107 = scmp.eq.s32.totalorder %s24, 3
      %p108 = por %p106, %p107
      %p110 = scmp.ne.s32.totalorder %s93, %s109
      %p111 = scmp.eq.s32.totalorder %s24, 0
      %p112 = por %p110, %p111
      %s113 = ssub.s32 %s25, %s44
      %s114 = ssub.s32 %s26, %s40
      %s115 = sor.u32 %s113, %s114
      %p116 = scmp.eq.s32.totalorder %s115, 0
      %s118 = sadd.s32 %s117, 1
      %s119 = scalar_select %p116, %s117, %s118
      %p122 = pneg %p116
      %p123 = scmp.eq.s32.totalorder %s18, 3
      %p124 = por %p122, %p123
      %p125 = scmp.ne.s32.totalorder %s117, %s120
      %p126 = scmp.eq.s32.totalorder %s18, 0
      %p127 = por %p125, %p126
      %p128 = scmp.ne.s32.totalorder %s117, %s120
      %p129 = scmp.eq.s32.totalorder %s23, 3
      %p130 = por %p128, %p129
      %p131 = scmp.ne.s32.totalorder %s120, %s121
      %p132 = scmp.eq.s32.totalorder %s23, 0
      %p133 = por %p131, %p132
      %p134 = scmp.ne.s32.totalorder %s120, %s121
      %p135 = scmp.eq.s32.totalorder %s24, 3
      %p136 = por %p134, %p135
      %p138 = scmp.ne.s32.totalorder %s121, %s137
      %p139 = scmp.eq.s32.totalorder %s24, 0
      %p140 = por %p138, %p139
      %s141 = ssub.s32 %s25, %s44
      %s142 = ssub.s32 %s27, %s36
      %s143 = sor.u32 %s141, %s142
      %p144 = scmp.eq.s32.totalorder %s143, 0
      %s146 = sadd.s32 %s145, 1
      %s147 = scalar_select %p144, %s145, %s146
      %p150 = pneg %p144
      %p151 = scmp.eq.s32.totalorder %s18, 3
      %p152 = por %p150, %p151
      %p153 = scmp.ne.s32.totalorder %s145, %s148
      %p154 = scmp.eq.s32.totalorder %s18, 0
      %p155 = por %p153, %p154
      %p156 = scmp.ne.s32.totalorder %s145, %s148
      %p157 = scmp.eq.s32.totalorder %s23, 3
      %p158 = por %p156, %p157
      %p159 = scmp.ne.s32.totalorder %s148, %s149
      %p160 = scmp.eq.s32.totalorder %s23, 0
      %p161 = por %p159, %p160
      %p162 = scmp.ne.s32.totalorder %s148, %s149
      %p163 = scmp.eq.s32.totalorder %s24, 3
      %p164 = por %p162, %p163
      %p166 = scmp.ne.s32.totalorder %s149, %s165
      %p167 = scmp.eq.s32.totalorder %s24, 0
      %p168 = por %p166, %p167
      %s169 = ssub.s32 %s25, %s44
      %s170 = ssub.s32 %s27, %s36
      %s171 = sor.u32 %s169, %s170
      %p172 = scmp.eq.s32.totalorder %s171, 0
      %s174 = sadd.s32 %s173, 1
      %s175 = scalar_select %p172, %s173, %s174
      %p178 = pneg %p172
      %p179 = scmp.eq.s32.totalorder %s18, 3
      %p180 = por %p178, %p179
      %p181 = scmp.ne.s32.totalorder %s173, %s176
      %p182 = scmp.eq.s32.totalorder %s18, 0
      %p183 = por %p181, %p182
      %p184 = scmp.ne.s32.totalorder %s173, %s176
      %p185 = scmp.eq.s32.totalorder %s23, 3
      %p186 = por %p184, %p185
      %p187 = scmp.ne.s32.totalorder %s176, %s177
      %p188 = scmp.eq.s32.totalorder %s23, 0
      %p189 = por %p187, %p188
      %p190 = scmp.ne.s32.totalorder %s176, %s177
      %p191 = scmp.eq.s32.totalorder %s24, 3
      %p192 = por %p190, %p191
      %p194 = scmp.ne.s32.totalorder %s177, %s193
      %p195 = scmp.eq.s32.totalorder %s24, 0
      %p196 = por %p194, %p195
      %s197 = ssub.s32 %s25, %s44
      %s198 = ssub.s32 %s26, %s40
      %s199 = sor.u32 %s197, %s198
      %p200 = scmp.eq.s32.totalorder %s199, 0
      %s202 = sadd.s32 %s201, 1
      %s203 = scalar_select %p200, %s201, %s202
      %p206 = pneg %p200
      %p207 = scmp.eq.s32.totalorder %s18, 3
      %p208 = por %p206, %p207
      %p209 = scmp.ne.s32.totalorder %s201, %s204
      %p210 = scmp.eq.s32.totalorder %s18, 0
      %p211 = por %p209, %p210
      %p212 = scmp.ne.s32.totalorder %s201, %s204
      %p213 = scmp.eq.s32.totalorder %s23, 3
      %p214 = por %p212, %p213
      %p215 = scmp.ne.s32.totalorder %s204, %s205
      %p216 = scmp.eq.s32.totalorder %s23, 0
      %p217 = por %p215, %p216
      %p218 = scmp.ne.s32.totalorder %s204, %s205
      %p219 = scmp.eq.s32.totalorder %s24, 3
      %p220 = por %p218, %p219
      %p222 = scmp.ne.s32.totalorder %s205, %s221
      %p223 = scmp.eq.s32.totalorder %s24, 0
      %p224 = por %p222, %p223
      %s225 = ssub.s32 %s25, %s44
      %s226 = ssub.s32 %s26, %s40
      %s227 = sor.u32 %s225, %s226
      %p228 = scmp.eq.s32.totalorder %s227, 0
      %s230 = sadd.s32 %s229, 1
      %s231 = scalar_select %p228, %s229, %s230
      %p234 = pneg %p228
      %p235 = scmp.eq.s32.totalorder %s18, 3
      %p236 = por %p234, %p235
      %p237 = scmp.ne.s32.totalorder %s229, %s232
      %p238 = scmp.eq.s32.totalorder %s18, 0
      %p239 = por %p237, %p238
      %p240 = scmp.ne.s32.totalorder %s229, %s232
      %p241 = scmp.eq.s32.totalorder %s23, 3
      %p242 = por %p240, %p241
      %p243 = scmp.ne.s32.totalorder %s232, %s233
      %p244 = scmp.eq.s32.totalorder %s23, 0
      %p245 = por %p243, %p244
      %p246 = scmp.ne.s32.totalorder %s232, %s233
      %p247 = scmp.eq.s32.totalorder %s24, 3
      %p248 = por %p246, %p247
      %p250 = scmp.ne.s32.totalorder %s233, %s249
      %p251 = scmp.eq.s32.totalorder %s24, 0
      %p252 = por %p250, %p251
      %p253 = scmp.le.s32.totalorder 1, %s18
      %p254 = scmp.lt.s32.totalorder %s18, 5
      %p255 = pnand %p253, %p254
      %p256 = pneg %p255
      // Predicated region
      $region9: #{adaattn_forward.1} parent=5 // pred_check
        _
      $region10: #{adaattn_forward.1} parent=5 // pred_check_branch
        %258 = sbr.rel (%p255) target = $region12
      $region11: #{adaattn_forward.1} parent=5 // pred_region
        %s259 = ssub.s32 %s18, 1
        // Predicated region
        $region13: #{adaattn_forward.1} parent=11 // pred_check
          %p260 = pneg %p58
        $region14: #{adaattn_forward.1} parent=11 // pred_check_branch
          %262 = sbr.rel (%p260) target = $region16
        $region15: #{adaattn_forward.1} parent=11 // pred_region
          %s264 = ssub.s32 256, 256
          %265 = vsyncadd [#allocation4], %s264
          %s266 = sshll.u32 [#allocation3], 4
          %s267 = int_to_ptr.vmem [resolvable:$true] %s266
          %272 = dma.hbm_to_vmem [thread:$0]  %s0, 256, %s267, [#allocation4], 128, 128, 8
        $region16: #{adaattn_forward.1} parent=11 // pred_fallthru
          _
        // Predicated region
        $region17: #{adaattn_forward.1} parent=11 // pred_check
          %p273 = pneg %p79
        $region18: #{adaattn_forward.1} parent=11 // pred_check_branch
          %275 = sbr.rel (%p273) target = $region20
        $region19: #{adaattn_forward.1} parent=11 // pred_region
          %s277 = ssub.s32 256, 256
          %278 = vsyncadd [#allocation7], %s277
          %s279 = sshll.u32 [#allocation6], 4
          %s280 = int_to_ptr.vmem [resolvable:$true] %s279
          %285 = dma.hbm_to_vmem [thread:$0]  %s1, 256, %s280, [#allocation7], 128, 128, 8
        $region20: #{adaattn_forward.1} parent=11 // pred_fallthru
          _
      $region12: #{adaattn_forward.1} parent=5 // pred_fallthru
        _
      %p286 = scmp.lt.s32.totalorder %s18, 4
      // Predicated region
      $region21: #{adaattn_forward.1} parent=5 // pred_check
        %p287 = pneg %p286
      $region22: #{adaattn_forward.1} parent=5 // pred_check_branch
        %289 = sbr.rel (%p287) target = $region24
      $region23: #{adaattn_forward.1} parent=5 // pred_region
        // Predicated region
        $region25: #{adaattn_forward.1} parent=23 // pred_check
          %p290 = pneg %p99
        $region26: #{adaattn_forward.1} parent=23 // pred_check_branch
          %292 = sbr.rel (%p290) target = $region28
        $region27: #{adaattn_forward.1} parent=23 // pred_region
          %s293 = sand.u32 %s18, 1
          %s294 = scalar_lea.sflag [#allocation4], %s293
          %s295 = sand.u32 %s89, 1
          %s296 = smul.addr %s295, 32
          %s297 = scalar_lea.vmem [#allocation8], %s296
          %s299 = ssub.s32 512, 512
          %300 = vsyncadd %s294, %s299
          %s301 = smul.addr %s25, 4
          %s302 = smul.addr %s301, 128
          %s303 = scalar_lea.hbm %s2, %s302
          %s304 = sshll.u32 %s297, 4
          %s305 = int_to_ptr.vmem [resolvable:$true] %s304
          %310 = dma.hbm_to_vmem [thread:$0]  %s303, 512, %s305, %s294, 128, 128, 8
        $region28: #{adaattn_forward.1} parent=23 // pred_fallthru
          _
        // Predicated region
        $region29: #{adaattn_forward.1} parent=23 // pred_check
          %p311 = pneg %p127
        $region30: #{adaattn_forward.1} parent=23 // pred_check_branch
          %313 = sbr.rel (%p311) target = $region32
        $region31: #{adaattn_forward.1} parent=23 // pred_region
          %s314 = sand.u32 %s18, 1
          %s315 = scalar_lea.sflag [#allocation4], %s314
          %s316 = sand.u32 %s117, 1
          %s317 = smul.addr %s316, 32
          %s318 = scalar_lea.vmem [#allocation9], %s317
          %s319 = smul.u32 4, %s26
          %s321 = ssub.s32 512, 512
          %322 = vsyncadd %s315, %s321
          %s323 = smul.addr %s25, 16
          %s324 = sadd.s32 %s319, %s323
          %s325 = smul.addr %s324, 64
          %s326 = scalar_lea.hbm %s3, %s325
          %s327 = sshll.u32 %s318, 4
          %s328 = int_to_ptr.vmem [resolvable:$true] %s327
          %333 = dma.hbm_to_vmem [thread:$0]  %s326, 512, %s328, %s315, 512, 256, 16
        $region32: #{adaattn_forward.1} parent=23 // pred_fallthru
          _
        // Predicated region
        $region33: #{adaattn_forward.1} parent=23 // pred_check
          %p334 = pneg %p155
        $region34: #{adaattn_forward.1} parent=23 // pred_check_branch
          %336 = sbr.rel (%p334) target = $region36
        $region35: #{adaattn_forward.1} parent=23 // pred_region
          %s337 = sand.u32 %s18, 1
          %s338 = scalar_lea.sflag [#allocation4], %s337
          %s339 = sand.u32 %s145, 1
          %s340 = smul.addr %s339, 8
          %s341 = scalar_lea.vmem [#allocation10], %s340
          %s343 = ssub.s32 128, 128
          %344 = vsyncadd %s338, %s343
          %s345 = smul.addr %s25, 2
          %s346 = sadd.s32 %s27, %s345
          %s347 = smul.addr %s346, 64
          %s348 = scalar_lea.hbm %s4, %s347
          %s349 = sshll.u32 %s341, 4
          %s350 = int_to_ptr.vmem [resolvable:$true] %s349
          %355 = dma.hbm_to_vmem [thread:$0]  %s348, 128, %s350, %s338, 64, 64, 4
        $region36: #{adaattn_forward.1} parent=23 // pred_fallthru
          _
        // Predicated region
        $region37: #{adaattn_forward.1} parent=23 // pred_check
          %p356 = pneg %p183
        $region38: #{adaattn_forward.1} parent=23 // pred_check_branch
          %358 = sbr.rel (%p356) target = $region40
        $region39: #{adaattn_forward.1} parent=23 // pred_region
          %s359 = sand.u32 %s18, 1
          %s360 = scalar_lea.sflag [#allocation4], %s359
          %s361 = sand.u32 %s173, 1
          %s362 = smul.addr %s361, 32
          %s363 = scalar_lea.vmem [#allocation11], %s362
          %s365 = ssub.s32 512, 512
          %366 = vsyncadd %s360, %s365
          %s367 = smul.addr %s25, 4
          %s368 = sadd.s32 %s27, %s367
          %s369 = smul.addr %s368, 128
          %s370 = scalar_lea.hbm %s5, %s369
          %s371 = sshll.u32 %s363, 4
          %s372 = int_to_ptr.vmem [resolvable:$true] %s371
          %377 = dma.hbm_to_vmem [thread:$0]  %s370, 512, %s372, %s360, 128, 128, 8
        $region40: #{adaattn_forward.1} parent=23 // pred_fallthru
          _
        // Predicated region
        $region41: #{adaattn_forward.1} parent=23 // pred_check
          %p378 = pneg %p211
        $region42: #{adaattn_forward.1} parent=23 // pred_check_branch
          %380 = sbr.rel (%p378) target = $region44
        $region43: #{adaattn_forward.1} parent=23 // pred_region
          %s381 = sand.u32 %s18, 1
          %s382 = scalar_lea.sflag [#allocation4], %s381
          %s383 = sand.u32 %s201, 1
          %s384 = smul.addr %s383, 64
          %s385 = scalar_lea.vmem [#allocation12], %s384
          %s386 = smul.u32 4, %s26
          %s388 = ssub.s32 1024, 1024
          %389 = vsyncadd %s382, %s388
          %s390 = smul.addr %s25, 16
          %s391 = sadd.s32 %s386, %s390
          %s392 = smul.addr %s391, 128
          %s393 = scalar_lea.hbm %s6, %s392
          %s394 = sshll.u32 %s385, 4
          %s395 = int_to_ptr.vmem [resolvable:$true] %s394
          %400 = dma.hbm_to_vmem [thread:$0]  %s393, 1024, %s395, %s382, 1024, 512, 32
        $region44: #{adaattn_forward.1} parent=23 // pred_fallthru
          _
      $region24: #{adaattn_forward.1} parent=5 // pred_fallthru
        _
      %p401 = scmp.le.s32.totalorder 1, %s18
      %p402 = scmp.lt.s32.totalorder %s18, 5
      %p403 = pnand %p401, %p402
      %p404 = pneg %p403
      // Predicated region
      $region45: #{adaattn_forward.1} parent=5 // pred_check
        _
      $region46: #{adaattn_forward.1} parent=5 // pred_check_branch
        %406 = sbr.rel (%p403) target = $region48
      $region47: #{adaattn_forward.1} parent=5 // pred_region
        %s407 = ssub.s32 %s18, 1
        // Predicated region
        $region49: #{adaattn_forward.1} parent=47 // pred_check
          %p408 = pneg %p58
        $region50: #{adaattn_forward.1} parent=47 // pred_check_branch
          %410 = sbr.rel (%p408) target = $region52
        $region51: #{adaattn_forward.1} parent=47 // pred_region
          %411 = dma.done [#allocation4], 256
        $region52: #{adaattn_forward.1} parent=47 // pred_fallthru
          _
        // Predicated region
        $region53: #{adaattn_forward.1} parent=47 // pred_check
          %p412 = pneg %p79
        $region54: #{adaattn_forward.1} parent=47 // pred_check_branch
          %414 = sbr.rel (%p412) target = $region56
        $region55: #{adaattn_forward.1} parent=47 // pred_region
          %415 = dma.done [#allocation7], 256
        $region56: #{adaattn_forward.1} parent=47 // pred_fallthru
          _
        %s416 = sand.u32 %s23, 1
        %s417 = scalar_lea.sflag [#allocation4], %s416
        %s418 = sand.u32 %s92, 1
        %s419 = smul.addr %s418, 32
        %s420 = scalar_lea.vmem [#allocation8], %s419
        // Predicated region
        $region57: #{adaattn_forward.1} parent=47 // pred_check
          %p421 = pneg %p105
        $region58: #{adaattn_forward.1} parent=47 // pred_check_branch
          %423 = sbr.rel (%p421) target = $region60
        $region59: #{adaattn_forward.1} parent=47 // pred_region
          %424 = dma.done %s417, 512
        $region60: #{adaattn_forward.1} parent=47 // pred_fallthru
          _
        %s425 = sand.u32 %s23, 1
        %s426 = scalar_lea.sflag [#allocation4], %s425
        %s427 = sand.u32 %s120, 1
        %s428 = smul.addr %s427, 32
        %s429 = scalar_lea.vmem [#allocation9], %s428
        // Predicated region
        $region61: #{adaattn_forward.1} parent=47 // pred_check
          %p430 = pneg %p133
        $region62: #{adaattn_forward.1} parent=47 // pred_check_branch
          %432 = sbr.rel (%p430) target = $region64
        $region63: #{adaattn_forward.1} parent=47 // pred_region
          %433 = dma.done %s426, 512
        $region64: #{adaattn_forward.1} parent=47 // pred_fallthru
          _
        %s434 = sand.u32 %s23, 1
        %s435 = scalar_lea.sflag [#allocation4], %s434
        %s436 = sand.u32 %s148, 1
        %s437 = smul.addr %s436, 8
        %s438 = scalar_lea.vmem [#allocation10], %s437
        // Predicated region
        $region65: #{adaattn_forward.1} parent=47 // pred_check
          %p439 = pneg %p161
        $region66: #{adaattn_forward.1} parent=47 // pred_check_branch
          %441 = sbr.rel (%p439) target = $region68
        $region67: #{adaattn_forward.1} parent=47 // pred_region
          %442 = dma.done %s435, 128
        $region68: #{adaattn_forward.1} parent=47 // pred_fallthru
          _
        %s443 = sand.u32 %s23, 1
        %s444 = scalar_lea.sflag [#allocation4], %s443
        %s445 = sand.u32 %s176, 1
        %s446 = smul.addr %s445, 32
        %s447 = scalar_lea.vmem [#allocation11], %s446
        // Predicated region
        $region69: #{adaattn_forward.1} parent=47 // pred_check
          %p448 = pneg %p189
        $region70: #{adaattn_forward.1} parent=47 // pred_check_branch
          %450 = sbr.rel (%p448) target = $region72
        $region71: #{adaattn_forward.1} parent=47 // pred_region
          %451 = dma.done %s444, 512
        $region72: #{adaattn_forward.1} parent=47 // pred_fallthru
          _
        %s452 = sand.u32 %s23, 1
        %s453 = scalar_lea.sflag [#allocation4], %s452
        %s454 = sand.u32 %s204, 1
        %s455 = smul.addr %s454, 64
        %s456 = scalar_lea.vmem [#allocation12], %s455
        // Predicated region
        $region73: #{adaattn_forward.1} parent=47 // pred_check
          %p457 = pneg %p217
        $region74: #{adaattn_forward.1} parent=47 // pred_check_branch
          %459 = sbr.rel (%p457) target = $region76
        $region75: #{adaattn_forward.1} parent=47 // pred_region
          %460 = dma.done %s453, 1024
        $region76: #{adaattn_forward.1} parent=47 // pred_fallthru
          _
        %p461 = pneg %p58
        %p462 = pneg %p55
        %p463 = pneg %p79
        %p464 = pneg %p76
        %s465 = sand.u32 %s23, 1
        %s466 = scalar_lea.sflag [#allocation4], %s465
        %s467 = sand.u32 %s92, 1
        %s468 = smul.addr %s467, 32
        %s469 = scalar_lea.vmem [#allocation8], %s468
        %p470 = pneg %p105
        %p471 = pneg %p102
        %s472 = sand.u32 %s23, 1
        %s473 = scalar_lea.sflag [#allocation4], %s472
        %s474 = sand.u32 %s120, 1
        %s475 = smul.addr %s474, 32
        %s476 = scalar_lea.vmem [#allocation9], %s475
        %p477 = pneg %p133
        %p478 = pneg %p130
        %s479 = sand.u32 %s23, 1
        %s480 = scalar_lea.sflag [#allocation4], %s479
        %s481 = sand.u32 %s148, 1
        %s482 = smul.addr %s481, 8
        %s483 = scalar_lea.vmem [#allocation10], %s482
        %p484 = pneg %p161
        %p485 = pneg %p158
        %s486 = sand.u32 %s23, 1
        %s487 = scalar_lea.sflag [#allocation4], %s486
        %s488 = sand.u32 %s176, 1
        %s489 = smul.addr %s488, 32
        %s490 = scalar_lea.vmem [#allocation11], %s489
        %p491 = pneg %p189
        %p492 = pneg %p186
        %s493 = sand.u32 %s23, 1
        %s494 = scalar_lea.sflag [#allocation4], %s493
        %s495 = sand.u32 %s204, 1
        %s496 = smul.addr %s495, 64
        %s497 = scalar_lea.vmem [#allocation12], %s496
        %p498 = pneg %p217
        %p499 = pneg %p214
        %p500 = pneg %p245
        %p501 = pneg %p242
        %s502 = sand.u32 %s232, 1
        %s503 = scalar_lea.sflag [#allocation5], %s502
        %s504 = sand.u32 %s232, 1
        %s505 = smul.addr %s504, 64
        %s506 = scalar_lea.vmem [#allocation13], %s505
        %s507 = smul.u32 4, %s29
        %s508 = smul.u32 4, %s29
        %s509 = smul.u32 4, %s29
        %p511 = scmp.eq.s32.totalorder %s30, 0
        // Predicated region
        $region77: #{adaattn_forward.1} parent=47 // pred_check
          %p512 = pneg %p511
        $region78: #{adaattn_forward.1} parent=47 // pred_check_branch
          %514 = sbr.rel (%p512) target = $region80
        $region79: #{adaattn_forward.1} parent=47 // pred_region
          %515 = vst [vmem:[#allocation2] sm:$0xff] 0.0
          %516 = vst [vmem:[#allocation2 + $0x8] sm:$0xff] 0.0
          %517 = vst [vmem:[#allocation2 + $0x10] sm:$0xff] 0.0
          %518 = vst [vmem:[#allocation2 + $0x18] sm:$0xff] 0.0
          %519 = vst [vmem:[#allocation2 + $0x20] sm:$0xff] 0.0
          %520 = vst [vmem:[#allocation2 + $0x28] sm:$0xff] 0.0
          %521 = vst [vmem:[#allocation2 + $0x30] sm:$0xff] 0.0
          %522 = vst [vmem:[#allocation2 + $0x38] sm:$0xff] 0.0
          %523 = vst [vmem:[#allocation2 + $0x40] sm:$0xff] 0.0
          %524 = vst [vmem:[#allocation2 + $0x48] sm:$0xff] 0.0
          %525 = vst [vmem:[#allocation2 + $0x50] sm:$0xff] 0.0
          %526 = vst [vmem:[#allocation2 + $0x58] sm:$0xff] 0.0
          %527 = vst [vmem:[#allocation2 + $0x60] sm:$0xff] 0.0
          %528 = vst [vmem:[#allocation2 + $0x68] sm:$0xff] 0.0
          %529 = vst [vmem:[#allocation2 + $0x70] sm:$0xff] 0.0
          %530 = vst [vmem:[#allocation2 + $0x78] sm:$0xff] 0.0
        $region80: #{adaattn_forward.1} parent=47 // pred_fallthru
          _
        %v531 = vld [vmem:[%s438] sm:$0xf]
        %v532 = vld [vmem:[%s438 + $0x4] sm:$0xf]
        %v533 = vld [vmem:[%s429] sm:$0xff]
        %v534 = vld [vmem:[%s429 + $0x8] sm:$0xff]
        %v535 = vld [vmem:[%s429 + $0x10] sm:$0xff]
        %v536 = vld [vmem:[%s429 + $0x18] sm:$0xff]
        %v539 = vunpack.c.l.b16 %v531
        %v540 = vunpack.c.l.b16 %v532
        %v541 = vpack.c.b16 %v540, %v539
        %543 = vxpose.xlu0.c.b16.start [1/8] %v541, 128
        %544 = vxpose.xlu0.c.b16.cont [2/8] 0, 128
        %545 = vxpose.xlu0.c.b16.cont [3/8] 0, 128
        %546 = vxpose.xlu0.c.b16.cont [4/8] 0, 128
        %547 = vxpose.xlu0.c.b16.cont [5/8] 0, 128
        %548 = vxpose.xlu0.c.b16.cont [6/8] 0, 128
        %549 = vxpose.xlu0.c.b16.cont [7/8] 0, 128
        %550 = vxpose.xlu0.c.b16.end [8/8] 0, 128
        %v551 = vpop.trf.xlu0
        %v552 = vpop.trf.xlu0
        %v553 = vpop.trf.xlu0
        %v554 = vpop.trf.xlu0
        %v555 = vpop.trf.xlu0
        %v556 = vpop.trf.xlu0
        %v557 = vpop.trf.xlu0
        %v558 = vpop.trf.xlu0
        %v563 = vunpack.c.l.b16 %v533
        %v564 = vunpack.c.h.b16 %v533
        %v565 = vunpack.c.l.b16 %v534
        %v566 = vunpack.c.h.b16 %v534
        %v567 = vunpack.c.l.b16 %v535
        %v568 = vunpack.c.h.b16 %v535
        %v569 = vunpack.c.l.b16 %v536
        %v570 = vunpack.c.h.b16 %v536
        %v571 = vpack.c.b16 %v567, %v563
        %v572 = vpack.c.b16 %v568, %v564
        %v573 = vpack.c.b16 %v569, %v565
        %v574 = vpack.c.b16 %v570, %v566
        %vm579 = vcmask 130048
        %v581 = vsel %vm579, %v551, 0
        %v584 = vsel %vm579, %v552, 0
        %v587 = vsel %vm579, %v553, 0
        %v590 = vsel %vm579, %v554, 0
        %v593 = vsel %vm579, %v555, 0
        %v596 = vsel %vm579, %v556, 0
        %v599 = vsel %vm579, %v557, 0
        %v602 = vsel %vm579, %v558, 0
        %604 = vmatprep.subr.bf16.mxu0 %v572
        %605 = vmatpush1.bf16.msra.mxu0 %v571
        %606 = vmatprep.subr.bf16.mxu0 0
        %607 = vmatpush1.bf16.msra.mxu0 0
        %608 = vmatprep.subr.bf16.mxu0 0
        %609 = vmatpush1.bf16.msra.mxu0 0
        %610 = vmatprep.subr.bf16.mxu0 0
        %611 = vmatpush1.bf16.msra.mxu0 0
        %612 = vmatprep.subr.bf16.mxu0 0
        %613 = vmatpush1.bf16.msra.mxu0 0
        %614 = vmatprep.subr.bf16.mxu0 0
        %615 = vmatpush1.bf16.msra.mxu0 0
        %616 = vmatprep.subr.bf16.mxu0 0
        %617 = vmatpush1.bf16.msra.mxu0 0
        %618 = vmatprep.subr.bf16.mxu0 0
        %619 = vmatpush1.bf16.msra.mxu0 0
        %620 = vmatprep.subr.bf16.mxu0 0
        %621 = vmatpush1.bf16.msra.mxu0 0
        %622 = vmatprep.subr.bf16.mxu0 0
        %623 = vmatpush1.bf16.msra.mxu0 0
        %624 = vmatprep.subr.bf16.mxu0 0
        %625 = vmatpush1.bf16.msra.mxu0 0
        %626 = vmatprep.subr.bf16.mxu0 0
        %627 = vmatpush1.bf16.msra.mxu0 0
        %628 = vmatprep.subr.bf16.mxu0 0
        %629 = vmatpush1.bf16.msra.mxu0 0
        %630 = vmatprep.subr.bf16.mxu0 0
        %631 = vmatpush1.bf16.msra.mxu0 0
        %632 = vmatprep.subr.bf16.mxu0 0
        %633 = vmatpush1.bf16.msra.mxu0 0
        %634 = vmatprep.subr.bf16.mxu0 0
        %635 = vmatpush1.bf16.msra.mxu0 0
        %636 = vmatprep.mubr.bf16.mxu0 0
        %637 = vmatmul.mubr.bf16.gmra.mrb[0].mxu0 %v581
        %v638 = vpop.f32.mrb[0].mxu0
        %v639 = vadd.f32 0.0, %v638
        %v640 = vpop.f32.mrb[0].mxu0
        %v641 = vadd.f32 0.0, %v640
        %v642 = vpop.f32.mrb[0].mxu0
        %v643 = vadd.f32 0.0, %v642
        %v644 = vpop.f32.mrb[0].mxu0
        %v645 = vadd.f32 0.0, %v644
        %646 = vmatprep.mubr.bf16.mxu0 0
        %647 = vmatmul.mubr.bf16.gmra.mrb[0].mxu0 %v584
        %v648 = vpop.f32.mrb[0].mxu0
        %v649 = vadd.f32 0.0, %v648
        %v650 = vpop.f32.mrb[0].mxu0
        %v651 = vadd.f32 0.0, %v650
        %v652 = vpop.f32.mrb[0].mxu0
        %v653 = vadd.f32 0.0, %v652
        %v654 = vpop.f32.mrb[0].mxu0
        %v655 = vadd.f32 0.0, %v654
        %656 = vmatprep.mubr.bf16.mxu0 0
        %657 = vmatmul.mubr.bf16.gmra.mrb[0].mxu0 %v587
        %v658 = vpop.f32.mrb[0].mxu0
        %v659 = vadd.f32 0.0, %v658
        %v660 = vpop.f32.mrb[0].mxu0
        %v661 = vadd.f32 0.0, %v660
        %v662 = vpop.f32.mrb[0].mxu0
        %v663 = vadd.f32 0.0, %v662
        %v664 = vpop.f32.mrb[0].mxu0
        %v665 = vadd.f32 0.0, %v664
        %666 = vmatprep.mubr.bf16.mxu0 0
        %667 = vmatmul.mubr.bf16.gmra.mrb[0].mxu0 %v590
        %v668 = vpop.f32.mrb[0].mxu0
        %v669 = vadd.f32 0.0, %v668
        %v670 = vpop.f32.mrb[0].mxu0
        %v671 = vadd.f32 0.0, %v670
        %v672 = vpop.f32.mrb[0].mxu0
        %v673 = vadd.f32 0.0, %v672
        %v674 = vpop.f32.mrb[0].mxu0
        %v675 = vadd.f32 0.0, %v674
        %676 = vmatprep.mubr.bf16.mxu0 0
        %677 = vmatmul.mubr.bf16.gmra.mrb[0].mxu0 %v593
        %v678 = vpop.f32.mrb[0].mxu0
        %v679 = vadd.f32 0.0, %v678
        %v680 = vpop.f32.mrb[0].mxu0
        %v681 = vadd.f32 0.0, %v680
        %v682 = vpop.f32.mrb[0].mxu0
        %v683 = vadd.f32 0.0, %v682
        %v684 = vpop.f32.mrb[0].mxu0
        %v685 = vadd.f32 0.0, %v684
        %686 = vmatprep.mubr.bf16.mxu0 0
        %687 = vmatmul.mubr.bf16.gmra.mrb[0].mxu0 %v596
        %v688 = vpop.f32.mrb[0].mxu0
        %v689 = vadd.f32 0.0, %v688
        %v690 = vpop.f32.mrb[0].mxu0
        %v691 = vadd.f32 0.0, %v690
        %v692 = vpop.f32.mrb[0].mxu0
        %v693 = vadd.f32 0.0, %v692
        %v694 = vpop.f32.mrb[0].mxu0
        %v695 = vadd.f32 0.0, %v694
        %696 = vmatprep.mubr.bf16.mxu0 0
        %697 = vmatmul.mubr.bf16.gmra.mrb[0].mxu0 %v599
        %v698 = vpop.f32.mrb[0].mxu0
        %v699 = vadd.f32 0.0, %v698
        %v700 = vpop.f32.mrb[0].mxu0
        %v701 = vadd.f32 0.0, %v700
        %v702 = vpop.f32.mrb[0].mxu0
        %v703 = vadd.f32 0.0, %v702
        %v704 = vpop.f32.mrb[0].mxu0
        %v705 = vadd.f32 0.0, %v704
        %706 = vmatprep.mubr.bf16.mxu0 0
        %707 = vmatmul.mubr.bf16.gmra.mrb[0].mxu0 %v602
        %v708 = vpop.f32.mrb[0].mxu0
        %v709 = vadd.f32 0.0, %v708
        %v710 = vpop.f32.mrb[0].mxu0
        %v711 = vadd.f32 0.0, %v710
        %v712 = vpop.f32.mrb[0].mxu0
        %v713 = vadd.f32 0.0, %v712
        %v714 = vpop.f32.mrb[0].mxu0
        %v715 = vadd.f32 0.0, %v714
        %716 = vdwg.mxu0
        %717 = vmatprep.subr.bf16.mxu0 %v574
        %718 = vmatpush1.bf16.msra.mxu0 %v573
        %719 = vmatprep.subr.bf16.mxu0 0
        %720 = vmatpush1.bf16.msra.mxu0 0
        %721 = vmatprep.subr.bf16.mxu0 0
        %722 = vmatpush1.bf16.msra.mxu0 0
        %723 = vmatprep.subr.bf16.mxu0 0
        %724 = vmatpush1.bf16.msra.mxu0 0
        %725 = vmatprep.subr.bf16.mxu0 0
        %726 = vmatpush1.bf16.msra.mxu0 0
        %727 = vmatprep.subr.bf16.mxu0 0
        %728 = vmatpush1.bf16.msra.mxu0 0
        %729 = vmatprep.subr.bf16.mxu0 0
        %730 = vmatpush1.bf16.msra.mxu0 0
        %731 = vmatprep.subr.bf16.mxu0 0
        %732 = vmatpush1.bf16.msra.mxu0 0
        %733 = vmatprep.subr.bf16.mxu0 0
        %734 = vmatpush1.bf16.msra.mxu0 0
        %735 = vmatprep.subr.bf16.mxu0 0
        %736 = vmatpush1.bf16.msra.mxu0 0
        %737 = vmatprep.subr.bf16.mxu0 0
        %738 = vmatpush1.bf16.msra.mxu0 0
        %739 = vmatprep.subr.bf16.mxu0 0
        %740 = vmatpush1.bf16.msra.mxu0 0
        %741 = vmatprep.subr.bf16.mxu0 0
        %742 = vmatpush1.bf16.msra.mxu0 0
        %743 = vmatprep.subr.bf16.mxu0 0
        %744 = vmatpush1.bf16.msra.mxu0 0
        %745 = vmatprep.subr.bf16.mxu0 0
        %746 = vmatpush1.bf16.msra.mxu0 0
        %747 = vmatprep.subr.bf16.mxu0 0
        %748 = vmatpush1.bf16.msra.mxu0 0
        %749 = vmatprep.mubr.bf16.mxu0 0
        %750 = vmatmul.mubr.bf16.gmra.mrb[0].mxu0 %v581
        %v751 = vpop.f32.mrb[0].mxu0
        %v752 = vadd.f32 0.0, %v751
        %v753 = vpop.f32.mrb[0].mxu0
        %v754 = vadd.f32 0.0, %v753
        %v755 = vpop.f32.mrb[0].mxu0
        %v756 = vadd.f32 0.0, %v755
        %v757 = vpop.f32.mrb[0].mxu0
        %v758 = vadd.f32 0.0, %v757
        %759 = vmatprep.mubr.bf16.mxu0 0
        %760 = vmatmul.mubr.bf16.gmra.mrb[0].mxu0 %v584
        %v761 = vpop.f32.mrb[0].mxu0
        %v762 = vadd.f32 0.0, %v761
        %v763 = vpop.f32.mrb[0].mxu0
        %v764 = vadd.f32 0.0, %v763
        %v765 = vpop.f32.mrb[0].mxu0
        %v766 = vadd.f32 0.0, %v765
        %v767 = vpop.f32.mrb[0].mxu0
        %v768 = vadd.f32 0.0, %v767
        %769 = vmatprep.mubr.bf16.mxu0 0
        %770 = vmatmul.mubr.bf16.gmra.mrb[0].mxu0 %v587
        %v771 = vpop.f32.mrb[0].mxu0
        %v772 = vadd.f32 0.0, %v771
        %v773 = vpop.f32.mrb[0].mxu0
        %v774 = vadd.f32 0.0, %v773
        %v775 = vpop.f32.mrb[0].mxu0
        %v776 = vadd.f32 0.0, %v775
        %v777 = vpop.f32.mrb[0].mxu0
        %v778 = vadd.f32 0.0, %v777
        %779 = vmatprep.mubr.bf16.mxu0 0
        %780 = vmatmul.mubr.bf16.gmra.mrb[0].mxu0 %v590
        %v781 = vpop.f32.mrb[0].mxu0
        %v782 = vadd.f32 0.0, %v781
        %v783 = vpop.f32.mrb[0].mxu0
        %v784 = vadd.f32 0.0, %v783
        %v785 = vpop.f32.mrb[0].mxu0
        %v786 = vadd.f32 0.0, %v785
        %v787 = vpop.f32.mrb[0].mxu0
        %v788 = vadd.f32 0.0, %v787
        %789 = vmatprep.mubr.bf16.mxu0 0
        %790 = vmatmul.mubr.bf16.gmra.mrb[0].mxu0 %v593
        %v791 = vpop.f32.mrb[0].mxu0
        %v792 = vadd.f32 0.0, %v791
        %v793 = vpop.f32.mrb[0].mxu0
        %v794 = vadd.f32 0.0, %v793
        %v795 = vpop.f32.mrb[0].mxu0
        %v796 = vadd.f32 0.0, %v795
        %v797 = vpop.f32.mrb[0].mxu0
        %v798 = vadd.f32 0.0, %v797
        %799 = vmatprep.mubr.bf16.mxu0 0
        %800 = vmatmul.mubr.bf16.gmra.mrb[0].mxu0 %v596
        %v801 = vpop.f32.mrb[0].mxu0
        %v802 = vadd.f32 0.0, %v801
        %v803 = vpop.f32.mrb[0].mxu0
        %v804 = vadd.f32 0.0, %v803
        %v805 = vpop.f32.mrb[0].mxu0
        %v806 = vadd.f32 0.0, %v805
        %v807 = vpop.f32.mrb[0].mxu0
        %v808 = vadd.f32 0.0, %v807
        %809 = vmatprep.mubr.bf16.mxu0 0
        %810 = vmatmul.mubr.bf16.gmra.mrb[0].mxu0 %v599
        %v811 = vpop.f32.mrb[0].mxu0
        %v812 = vadd.f32 0.0, %v811
        %v813 = vpop.f32.mrb[0].mxu0
        %v814 = vadd.f32 0.0, %v813
        %v815 = vpop.f32.mrb[0].mxu0
        %v816 = vadd.f32 0.0, %v815
        %v817 = vpop.f32.mrb[0].mxu0
        %v818 = vadd.f32 0.0, %v817
        %819 = vmatprep.mubr.bf16.mxu0 0
        %820 = vmatmul.mubr.bf16.gmra.mrb[0].mxu0 %v602
        %v821 = vpop.f32.mrb[0].mxu0
        %v822 = vadd.f32 0.0, %v821
        %v823 = vpop.f32.mrb[0].mxu0
        %v824 = vadd.f32 0.0, %v823
        %v825 = vpop.f32.mrb[0].mxu0
        %v826 = vadd.f32 0.0, %v825
        %v827 = vpop.f32.mrb[0].mxu0
        %v828 = vadd.f32 0.0, %v827
        %829 = vdwg.mxu0
        %v830 = vld [vmem:[#allocation2] sm:$0xff]
        %v831 = vld [vmem:[#allocation2 + $0x8] sm:$0xff]
        %v832 = vld [vmem:[#allocation2 + $0x10] sm:$0xff]
        %v833 = vld [vmem:[#allocation2 + $0x18] sm:$0xff]
        %v834 = vld [vmem:[#allocation2 + $0x20] sm:$0xff]
        %v835 = vld [vmem:[#allocation2 + $0x28] sm:$0xff]
        %v836 = vld [vmem:[#allocation2 + $0x30] sm:$0xff]
        %v837 = vld [vmem:[#allocation2 + $0x38] sm:$0xff]
        %v838 = vld [vmem:[#allocation2 + $0x40] sm:$0xff]
        %v839 = vld [vmem:[#allocation2 + $0x48] sm:$0xff]
        %v840 = vld [vmem:[#allocation2 + $0x50] sm:$0xff]
        %v841 = vld [vmem:[#allocation2 + $0x58] sm:$0xff]
        %v842 = vld [vmem:[#allocation2 + $0x60] sm:$0xff]
        %v843 = vld [vmem:[#allocation2 + $0x68] sm:$0xff]
        %v844 = vld [vmem:[#allocation2 + $0x70] sm:$0xff]
        %v845 = vld [vmem:[#allocation2 + $0x78] sm:$0xff]
        %v846 = vld [vmem:[%s447] sm:$0xff]
        %v847 = vld [vmem:[%s447 + $0x8] sm:$0xff]
        %v848 = vld [vmem:[%s447 + $0x10] sm:$0xff]
        %v849 = vld [vmem:[%s447 + $0x18] sm:$0xff]
        %v850 = vtanh.pop %v639
        %v851 = vtanh.pop %v641
        %v852 = vtanh.pop %v752
        %v853 = vtanh.pop %v754
        %v854 = vtanh.pop %v643
        %v855 = vtanh.pop %v645
        %v856 = vtanh.pop %v756
        %v857 = vtanh.pop %v758
        %v858 = vtanh.pop %v649
        %v859 = vtanh.pop %v651
        %v860 = vtanh.pop %v762
        %v861 = vtanh.pop %v764
        %v862 = vtanh.pop %v653
        %v863 = vtanh.pop %v655
        %v864 = vtanh.pop %v766
        %v865 = vtanh.pop %v768
        %v866 = vtanh.pop %v659
        %v867 = vtanh.pop %v661
        %v868 = vtanh.pop %v772
        %v869 = vtanh.pop %v774
        %v870 = vtanh.pop %v663
        %v871 = vtanh.pop %v665
        %v872 = vtanh.pop %v776
        %v873 = vtanh.pop %v778
        %v874 = vtanh.pop %v669
        %v875 = vtanh.pop %v671
        %v876 = vtanh.pop %v782
        %v877 = vtanh.pop %v784
        %v878 = vtanh.pop %v673
        %v879 = vtanh.pop %v675
        %v880 = vtanh.pop %v786
        %v881 = vtanh.pop %v788
        %v882 = vtanh.pop %v679
        %v883 = vtanh.pop %v681
        %v884 = vtanh.pop %v792
        %v885 = vtanh.pop %v794
        %v886 = vtanh.pop %v683
        %v887 = vtanh.pop %v685
        %v888 = vtanh.pop %v796
        %v889 = vtanh.pop %v798
        %v890 = vtanh.pop %v689
        %v891 = vtanh.pop %v691
        %v892 = vtanh.pop %v802
        %v893 = vtanh.pop %v804
        %v894 = vtanh.pop %v693
        %v895 = vtanh.pop %v695
        %v896 = vtanh.pop %v806
        %v897 = vtanh.pop %v808
        %v898 = vtanh.pop %v699
        %v899 = vtanh.pop %v701
        %v900 = vtanh.pop %v812
        %v901 = vtanh.pop %v814
        %v902 = vtanh.pop %v703
        %v903 = vtanh.pop %v705
        %v904 = vtanh.pop %v816
        %v905 = vtanh.pop %v818
        %v906 = vtanh.pop %v709
        %v907 = vtanh.pop %v711
        %v908 = vtanh.pop %v822
        %v909 = vtanh.pop %v824
        %v910 = vtanh.pop %v713
        %v911 = vtanh.pop %v715
        %v912 = vtanh.pop %v826
        %v913 = vtanh.pop %v828
        %914 = vmatprep.subr.mxu0 %v851
        %915 = vmatpush1.msra.mxu0 %v850
        %916 = vmatprep.subr.mxu0 %v855
        %917 = vmatpush1.msra.mxu0 %v854
        %918 = vmatprep.subr.mxu0 %v859
        %919 = vmatpush1.msra.mxu0 %v858
        %920 = vmatprep.subr.mxu0 %v863
        %921 = vmatpush1.msra.mxu0 %v862
        %922 = vmatprep.subr.mxu0 %v867
        %923 = vmatpush1.msra.mxu0 %v866
        %924 = vmatprep.subr.mxu0 %v871
        %925 = vmatpush1.msra.mxu0 %v870
        %926 = vmatprep.subr.mxu0 %v875
        %927 = vmatpush1.msra.mxu0 %v874
        %928 = vmatprep.subr.mxu0 %v879
        %929 = vmatpush1.msra.mxu0 %v878
        %930 = vmatprep.subr.mxu0 %v883
        %931 = vmatpush1.msra.mxu0 %v882
        %932 = vmatprep.subr.mxu0 %v887
        %933 = vmatpush1.msra.mxu0 %v886
        %934 = vmatprep.subr.mxu0 %v891
        %935 = vmatpush1.msra.mxu0 %v890
        %936 = vmatprep.subr.mxu0 %v895
        %937 = vmatpush1.msra.mxu0 %v894
        %938 = vmatprep.subr.mxu0 %v899
        %939 = vmatpush1.msra.mxu0 %v898
        %940 = vmatprep.subr.mxu0 %v903
        %941 = vmatpush1.msra.mxu0 %v902
        %942 = vmatprep.subr.mxu0 %v907
        %943 = vmatpush1.msra.mxu0 %v906
        %944 = vmatprep.subr.mxu0 %v911
        %945 = vmatpush1.msra.mxu0 %v910
        %946 = vmatprep.subr.mxu0 0.0
        %947 = vmatpush1.msra.mxu0 0.0
        %948 = vmatprep.subr.mxu0 0.0
        %949 = vmatpush1.msra.mxu0 0.0
        %950 = vmatprep.subr.mxu0 0.0
        %951 = vmatpush1.msra.mxu0 0.0
        %952 = vmatprep.subr.mxu0 0.0
        %953 = vmatpush1.msra.mxu0 0.0
        %954 = vmatprep.subr.mxu0 0.0
        %955 = vmatpush1.msra.mxu0 0.0
        %956 = vmatprep.subr.mxu0 0.0
        %957 = vmatpush1.msra.mxu0 0.0
        %958 = vmatprep.subr.mxu0 0.0
        %959 = vmatpush1.msra.mxu0 0.0
        %960 = vmatprep.subr.mxu0 0.0
        %961 = vmatpush1.msra.mxu0 0.0
        %962 = vmatprep.subr.mxu0 0.0
        %963 = vmatpush1.msra.mxu0 0.0
        %964 = vmatprep.subr.mxu0 0.0
        %965 = vmatpush1.msra.mxu0 0.0
        %966 = vmatprep.subr.mxu0 0.0
        %967 = vmatpush1.msra.mxu0 0.0
        %968 = vmatprep.subr.mxu0 0.0
        %969 = vmatpush1.msra.mxu0 0.0
        %970 = vmatprep.subr.mxu0 0.0
        %971 = vmatpush1.msra.mxu0 0.0
        %972 = vmatprep.subr.mxu0 0.0
        %973 = vmatpush1.msra.mxu0 0.0
        %974 = vmatprep.subr.mxu0 0.0
        %975 = vmatpush1.msra.mxu0 0.0
        %976 = vmatprep.subr.mxu0 0.0
        %977 = vmatpush1.msra.mxu0 0.0
        %978 = vmatprep.mubr.f32.mxu0 0.0
        %979 = vmatmul.mubr.f32.gmra.mrb[0].mxu0 %v846
        %v980 = vpop.f32.mrb[0].mxu0
        %v981 = vadd.f32 0.0, %v980
        %v982 = vpop.f32.mrb[0].mxu0
        %v983 = vadd.f32 0.0, %v982
        %984 = vmatprep.mubr.f32.mxu0 0.0
        %985 = vmatmul.mubr.f32.gmra.mrb[0].mxu0 %v847
        %v986 = vpop.f32.mrb[0].mxu0
        %v987 = vadd.f32 0.0, %v986
        %v988 = vpop.f32.mrb[0].mxu0
        %v989 = vadd.f32 0.0, %v988
        %990 = vmatprep.mubr.f32.mxu0 0.0
        %991 = vmatmul.mubr.f32.gmra.mrb[0].mxu0 %v848
        %v992 = vpop.f32.mrb[0].mxu0
        %v993 = vadd.f32 0.0, %v992
        %v994 = vpop.f32.mrb[0].mxu0
        %v995 = vadd.f32 0.0, %v994
        %996 = vmatprep.mubr.f32.mxu0 0.0
        %997 = vmatmul.mubr.f32.gmra.mrb[0].mxu0 %v849
        %v998 = vpop.f32.mrb[0].mxu0
        %v999 = vadd.f32 0.0, %v998
        %v1000 = vpop.f32.mrb[0].mxu0
        %v1001 = vadd.f32 0.0, %v1000
        %1002 = vdwg.mxu0
        %1003 = vmatprep.subr.mxu0 %v853
        %1004 = vmatpush1.msra.mxu0 %v852
        %1005 = vmatprep.subr.mxu0 %v857
        %1006 = vmatpush1.msra.mxu0 %v856
        %1007 = vmatprep.subr.mxu0 %v861
        %1008 = vmatpush1.msra.mxu0 %v860
        %1009 = vmatprep.subr.mxu0 %v865
        %1010 = vmatpush1.msra.mxu0 %v864
        %1011 = vmatprep.subr.mxu0 %v869
        %1012 = vmatpush1.msra.mxu0 %v868
        %1013 = vmatprep.subr.mxu0 %v873
        %1014 = vmatpush1.msra.mxu0 %v872
        %1015 = vmatprep.subr.mxu0 %v877
        %1016 = vmatpush1.msra.mxu0 %v876
        %1017 = vmatprep.subr.mxu0 %v881
        %1018 = vmatpush1.msra.mxu0 %v880
        %1019 = vmatprep.subr.mxu0 %v885
        %1020 = vmatpush1.msra.mxu0 %v884
        %1021 = vmatprep.subr.mxu0 %v889
        %1022 = vmatpush1.msra.mxu0 %v888
        %1023 = vmatprep.subr.mxu0 %v893
        %1024 = vmatpush1.msra.mxu0 %v892
        %1025 = vmatprep.subr.mxu0 %v897
        %1026 = vmatpush1.msra.mxu0 %v896
        %1027 = vmatprep.subr.mxu0 %v901
        %1028 = vmatpush1.msra.mxu0 %v900
        %1029 = vmatprep.subr.mxu0 %v905
        %1030 = vmatpush1.msra.mxu0 %v904
        %1031 = vmatprep.subr.mxu0 %v909
        %1032 = vmatpush1.msra.mxu0 %v908
        %1033 = vmatprep.subr.mxu0 %v913
        %1034 = vmatpush1.msra.mxu0 %v912
        %1035 = vmatprep.subr.mxu0 0.0
        %1036 = vmatpush1.msra.mxu0 0.0
        %1037 = vmatprep.subr.mxu0 0.0
        %1038 = vmatpush1.msra.mxu0 0.0
        %1039 = vmatprep.subr.mxu0 0.0
        %1040 = vmatpush1.msra.mxu0 0.0
        %1041 = vmatprep.subr.mxu0 0.0
        %1042 = vmatpush1.msra.mxu0 0.0
        %1043 = vmatprep.subr.mxu0 0.0
        %1044 = vmatpush1.msra.mxu0 0.0
        %1045 = vmatprep.subr.mxu0 0.0
        %1046 = vmatpush1.msra.mxu0 0.0
        %1047 = vmatprep.subr.mxu0 0.0
        %1048 = vmatpush1.msra.mxu0 0.0
        %1049 = vmatprep.subr.mxu0 0.0
        %1050 = vmatpush1.msra.mxu0 0.0
        %1051 = vmatprep.subr.mxu0 0.0
        %1052 = vmatpush1.msra.mxu0 0.0
        %1053 = vmatprep.subr.mxu0 0.0
        %1054 = vmatpush1.msra.mxu0 0.0
        %1055 = vmatprep.subr.mxu0 0.0
        %1056 = vmatpush1.msra.mxu0 0.0
        %1057 = vmatprep.subr.mxu0 0.0
        %1058 = vmatpush1.msra.mxu0 0.0
        %1059 = vmatprep.subr.mxu0 0.0
        %1060 = vmatpush1.msra.mxu0 0.0
        %1061 = vmatprep.subr.mxu0 0.0
        %1062 = vmatpush1.msra.mxu0 0.0
        %1063 = vmatprep.subr.mxu0 0.0
        %1064 = vmatpush1.msra.mxu0 0.0
        %1065 = vmatprep.subr.mxu0 0.0
        %1066 = vmatpush1.msra.mxu0 0.0
        %1067 = vmatprep.mubr.f32.mxu0 0.0
        %1068 = vmatmul.mubr.f32.gmra.mrb[0].mxu0 %v846
        %v1069 = vpop.f32.mrb[0].mxu0
        %v1070 = vadd.f32 0.0, %v1069
        %v1071 = vpop.f32.mrb[0].mxu0
        %v1072 = vadd.f32 0.0, %v1071
        %1073 = vmatprep.mubr.f32.mxu0 0.0
        %1074 = vmatmul.mubr.f32.gmra.mrb[0].mxu0 %v847
        %v1075 = vpop.f32.mrb[0].mxu0
        %v1076 = vadd.f32 0.0, %v1075
        %v1077 = vpop.f32.mrb[0].mxu0
        %v1078 = vadd.f32 0.0, %v1077
        %1079 = vmatprep.mubr.f32.mxu0 0.0
        %1080 = vmatmul.mubr.f32.gmra.mrb[0].mxu0 %v848
        %v1081 = vpop.f32.mrb[0].mxu0
        %v1082 = vadd.f32 0.0, %v1081
        %v1083 = vpop.f32.mrb[0].mxu0
        %v1084 = vadd.f32 0.0, %v1083
        %1085 = vmatprep.mubr.f32.mxu0 0.0
        %1086 = vmatmul.mubr.f32.gmra.mrb[0].mxu0 %v849
        %v1087 = vpop.f32.mrb[0].mxu0
        %v1088 = vadd.f32 0.0, %v1087
        %v1089 = vpop.f32.mrb[0].mxu0
        %v1090 = vadd.f32 0.0, %v1089
        %1091 = vdwg.mxu0
        %v1092 = vadd.f32 %v830, %v981
        %v1093 = vadd.f32 %v831, %v983
        %v1094 = vadd.f32 %v832, %v1070
        %v1095 = vadd.f32 %v833, %v1072
        %v1096 = vadd.f32 %v834, %v987
        %v1097 = vadd.f32 %v835, %v989
        %v1098 = vadd.f32 %v836, %v1076
        %v1099 = vadd.f32 %v837, %v1078
        %v1100 = vadd.f32 %v838, %v993
        %v1101 = vadd.f32 %v839, %v995
        %v1102 = vadd.f32 %v840, %v1082
        %v1103 = vadd.f32 %v841, %v1084
        %v1104 = vadd.f32 %v842, %v999
        %v1105 = vadd.f32 %v843, %v1001
        %v1106 = vadd.f32 %v844, %v1088
        %v1107 = vadd.f32 %v845, %v1090
        %1108 = vst [vmem:[#allocation2] sm:$0xff] %v1092
        %1109 = vst [vmem:[#allocation2 + $0x8] sm:$0xff] %v1093
        %1110 = vst [vmem:[#allocation2 + $0x10] sm:$0xff] %v1094
        %1111 = vst [vmem:[#allocation2 + $0x18] sm:$0xff] %v1095
        %1112 = vst [vmem:[#allocation2 + $0x20] sm:$0xff] %v1096
        %1113 = vst [vmem:[#allocation2 + $0x28] sm:$0xff] %v1097
        %1114 = vst [vmem:[#allocation2 + $0x30] sm:$0xff] %v1098
        %1115 = vst [vmem:[#allocation2 + $0x38] sm:$0xff] %v1099
        %1116 = vst [vmem:[#allocation2 + $0x40] sm:$0xff] %v1100
        %1117 = vst [vmem:[#allocation2 + $0x48] sm:$0xff] %v1101
        %1118 = vst [vmem:[#allocation2 + $0x50] sm:$0xff] %v1102
        %1119 = vst [vmem:[#allocation2 + $0x58] sm:$0xff] %v1103
        %1120 = vst [vmem:[#allocation2 + $0x60] sm:$0xff] %v1104
        %1121 = vst [vmem:[#allocation2 + $0x68] sm:$0xff] %v1105
        %1122 = vst [vmem:[#allocation2 + $0x70] sm:$0xff] %v1106
        %1123 = vst [vmem:[#allocation2 + $0x78] sm:$0xff] %v1107
        // Predicated region
        $region81: #{adaattn_forward.1} parent=47 // pred_check
          %p1124 = pneg %p511
        $region82: #{adaattn_forward.1} parent=47 // pred_check_branch
          %1126 = sbr.rel (%p1124) target = $region84
        $region83: #{adaattn_forward.1} parent=47 // pred_region
          %v1127 = vld [vmem:[#allocation2] sm:$0xff]
          %v1128 = vld [vmem:[#allocation2 + $0x8] sm:$0xff]
          %v1129 = vld [vmem:[#allocation2 + $0x10] sm:$0xff]
          %v1130 = vld [vmem:[#allocation2 + $0x18] sm:$0xff]
          %v1131 = vld [vmem:[#allocation2 + $0x20] sm:$0xff]
          %v1132 = vld [vmem:[#allocation2 + $0x28] sm:$0xff]
          %v1133 = vld [vmem:[#allocation2 + $0x30] sm:$0xff]
          %v1134 = vld [vmem:[#allocation2 + $0x38] sm:$0xff]
          %v1135 = vld [vmem:[#allocation2 + $0x40] sm:$0xff]
          %v1136 = vld [vmem:[#allocation2 + $0x48] sm:$0xff]
          %v1137 = vld [vmem:[#allocation2 + $0x50] sm:$0xff]
          %v1138 = vld [vmem:[#allocation2 + $0x58] sm:$0xff]
          %v1139 = vld [vmem:[#allocation2 + $0x60] sm:$0xff]
          %v1140 = vld [vmem:[#allocation2 + $0x68] sm:$0xff]
          %v1141 = vld [vmem:[#allocation2 + $0x70] sm:$0xff]
          %v1142 = vld [vmem:[#allocation2 + $0x78] sm:$0xff]
          %v1143 = vld [vmem:[%s420] sm:$0xff]
          %v1144 = vld [vmem:[%s420 + $0x8] sm:$0xff]
          %v1145 = vld [vmem:[%s420 + $0x10] sm:$0xff]
          %v1146 = vld [vmem:[%s420 + $0x18] sm:$0xff]
          %1148 = vset.pattern.permute.xlu0 0
          %1149 = vperm.xlu0 %1148, %v1143
          %v1150 = vpop.permute.xlu0 %1149
          %1153 = vset.pattern.permute.xlu0 0
          %1154 = vperm.xlu0 %1153, %v1144
          %v1155 = vpop.permute.xlu0 %1154
          %1158 = vset.pattern.permute.xlu0 0
          %1159 = vperm.xlu0 %1158, %v1145
          %v1160 = vpop.permute.xlu0 %1159
          %1163 = vset.pattern.permute.xlu0 0
          %1164 = vperm.xlu0 %1163, %v1146
          %v1165 = vpop.permute.xlu0 %1164
          %v1167 = vadd.f32 %v1127, %v1150
          %v1168 = vadd.f32 %v1128, %v1150
          %v1169 = vadd.f32 %v1129, %v1150
          %v1170 = vadd.f32 %v1130, %v1150
          %v1171 = vadd.f32 %v1131, %v1155
          %v1172 = vadd.f32 %v1132, %v1155
          %v1173 = vadd.f32 %v1133, %v1155
          %v1174 = vadd.f32 %v1134, %v1155
          %v1175 = vadd.f32 %v1135, %v1160
          %v1176 = vadd.f32 %v1136, %v1160
          %v1177 = vadd.f32 %v1137, %v1160
          %v1178 = vadd.f32 %v1138, %v1160
          %v1179 = vadd.f32 %v1139, %v1165
          %v1180 = vadd.f32 %v1140, %v1165
          %v1181 = vadd.f32 %v1141, %v1165
          %v1182 = vadd.f32 %v1142, %v1165
          %v1183 = vmul.f32 %v1167, %v1167
          %v1184 = vmul.f32 %v1168, %v1168
          %v1185 = vmul.f32 %v1169, %v1169
          %v1186 = vmul.f32 %v1170, %v1170
          %v1187 = vmul.f32 %v1171, %v1171
          %v1188 = vmul.f32 %v1172, %v1172
          %v1189 = vmul.f32 %v1173, %v1173
          %v1190 = vmul.f32 %v1174, %v1174
          %v1191 = vsub.f32 %v1175, %v1183
          %v1192 = vsub.f32 %v1176, %v1184
          %v1193 = vsub.f32 %v1177, %v1185
          %v1194 = vsub.f32 %v1178, %v1186
          %v1195 = vsub.f32 %v1179, %v1187
          %v1196 = vsub.f32 %v1180, %v1188
          %v1197 = vsub.f32 %v1181, %v1189
          %v1198 = vsub.f32 %v1182, %v1190
          %v1199 = vmax.f32 %v1191, 0.0
          %v1200 = vmax.f32 %v1192, 0.0
          %v1201 = vmax.f32 %v1193, 0.0
          %v1202 = vmax.f32 %v1194, 0.0
          %v1203 = vmax.f32 %v1195, 0.0
          %v1204 = vmax.f32 %v1196, 0.0
          %v1205 = vmax.f32 %v1197, 0.0
          %v1206 = vmax.f32 %v1198, 0.0
          %v1207 = vadd.f32 %v1199, 1e-08
          %v1208 = vadd.f32 %v1200, 1e-08
          %v1209 = vadd.f32 %v1201, 1e-08
          %v1210 = vadd.f32 %v1202, 1e-08
          %v1211 = vadd.f32 %v1203, 1e-08
          %v1212 = vadd.f32 %v1204, 1e-08
          %v1213 = vadd.f32 %v1205, 1e-08
          %v1214 = vadd.f32 %v1206, 1e-08
          %v1215 = vrsqrt.pop %v1207
          %v1216 = vmul.f32 %v1207, %v1215
          %vm1217 = vcmp.eq.f32.partialorder %v1207, inf
          %v1218 = vsel %vm1217, %v1207, %v1216
          %vm1219 = vcmp.eq.f32.partialorder %v1207, 0.0
          %v1220 = vand.u32 %v1207, 2147483648
          %v1221 = vsel %vm1219, %v1220, %v1218
          %v1222 = vrsqrt.pop %v1208
          %v1223 = vmul.f32 %v1208, %v1222
          %vm1224 = vcmp.eq.f32.partialorder %v1208, inf
          %v1225 = vsel %vm1224, %v1208, %v1223
          %vm1226 = vcmp.eq.f32.partialorder %v1208, 0.0
          %v1227 = vand.u32 %v1208, 2147483648
          %v1228 = vsel %vm1226, %v1227, %v1225
          %v1229 = vrsqrt.pop %v1209
          %v1230 = vmul.f32 %v1209, %v1229
          %vm1231 = vcmp.eq.f32.partialorder %v1209, inf
          %v1232 = vsel %vm1231, %v1209, %v1230
          %vm1233 = vcmp.eq.f32.partialorder %v1209, 0.0
          %v1234 = vand.u32 %v1209, 2147483648
          %v1235 = vsel %vm1233, %v1234, %v1232
          %v1236 = vrsqrt.pop %v1210
          %v1237 = vmul.f32 %v1210, %v1236
          %vm1238 = vcmp.eq.f32.partialorder %v1210, inf
          %v1239 = vsel %vm1238, %v1210, %v1237
          %vm1240 = vcmp.eq.f32.partialorder %v1210, 0.0
          %v1241 = vand.u32 %v1210, 2147483648
          %v1242 = vsel %vm1240, %v1241, %v1239
          %v1243 = vrsqrt.pop %v1211
          %v1244 = vmul.f32 %v1211, %v1243
          %vm1245 = vcmp.eq.f32.partialorder %v1211, inf
          %v1246 = vsel %vm1245, %v1211, %v1244
          %vm1247 = vcmp.eq.f32.partialorder %v1211, 0.0
          %v1248 = vand.u32 %v1211, 2147483648
          %v1249 = vsel %vm1247, %v1248, %v1246
          %v1250 = vrsqrt.pop %v1212
          %v1251 = vmul.f32 %v1212, %v1250
          %vm1252 = vcmp.eq.f32.partialorder %v1212, inf
          %v1253 = vsel %vm1252, %v1212, %v1251
          %vm1254 = vcmp.eq.f32.partialorder %v1212, 0.0
          %v1255 = vand.u32 %v1212, 2147483648
          %v1256 = vsel %vm1254, %v1255, %v1253
          %v1257 = vrsqrt.pop %v1213
          %v1258 = vmul.f32 %v1213, %v1257
          %vm1259 = vcmp.eq.f32.partialorder %v1213, inf
          %v1260 = vsel %vm1259, %v1213, %v1258
          %vm1261 = vcmp.eq.f32.partialorder %v1213, 0.0
          %v1262 = vand.u32 %v1213, 2147483648
          %v1263 = vsel %vm1261, %v1262, %v1260
          %v1264 = vrsqrt.pop %v1214
          %v1265 = vmul.f32 %v1214, %v1264
          %vm1266 = vcmp.eq.f32.partialorder %v1214, inf
          %v1267 = vsel %vm1266, %v1214, %v1265
          %vm1268 = vcmp.eq.f32.partialorder %v1214, 0.0
          %v1269 = vand.u32 %v1214, 2147483648
          %v1270 = vsel %vm1268, %v1269, %v1267
          %v1271 = vld [vmem:[%s456] sm:$0xff]
          %v1272 = vld [vmem:[%s456 + $0x8] sm:$0xff]
          %v1273 = vld [vmem:[%s456 + $0x10] sm:$0xff]
          %v1274 = vld [vmem:[%s456 + $0x18] sm:$0xff]
          %v1275 = vld [vmem:[%s456 + $0x20] sm:$0xff]
          %v1276 = vld [vmem:[%s456 + $0x28] sm:$0xff]
          %v1277 = vld [vmem:[%s456 + $0x30] sm:$0xff]
          %v1278 = vld [vmem:[%s456 + $0x38] sm:$0xff]
          %v1279 = vld [vmem:[#allocation3] sm:$0xff]
          %v1280 = vld [vmem:[#allocation3 + $0x8] sm:$0xff]
          %1282 = vset.pattern.permute.xlu0 0
          %1283 = vperm.xlu0 %1282, %v1279
          %v1284 = vpop.permute.xlu0 %1283
          %1287 = vset.pattern.permute.xlu0 0
          %1288 = vperm.xlu0 %1287, %v1280
          %v1289 = vpop.permute.xlu0 %1288
          %v1291 = vmul.f32 %v1271, %v1284
          %v1292 = vmul.f32 %v1272, %v1284
          %v1293 = vmul.f32 %v1273, %v1284
          %v1294 = vmul.f32 %v1274, %v1284
          %v1295 = vmul.f32 %v1275, %v1289
          %v1296 = vmul.f32 %v1276, %v1289
          %v1297 = vmul.f32 %v1277, %v1289
          %v1298 = vmul.f32 %v1278, %v1289
          %v1299 = vld [vmem:[#allocation6] sm:$0xff]
          %v1300 = vld [vmem:[#allocation6 + $0x8] sm:$0xff]
          %1302 = vset.pattern.permute.xlu0 0
          %1303 = vperm.xlu0 %1302, %v1299
          %v1304 = vpop.permute.xlu0 %1303
          %1307 = vset.pattern.permute.xlu0 0
          %1308 = vperm.xlu0 %1307, %v1300
          %v1309 = vpop.permute.xlu0 %1308
          %v1311 = vsub.f32 %v1291, %v1304
          %v1312 = vsub.f32 %v1292, %v1304
          %v1313 = vsub.f32 %v1293, %v1304
          %v1314 = vsub.f32 %v1294, %v1304
          %v1315 = vsub.f32 %v1295, %v1309
          %v1316 = vsub.f32 %v1296, %v1309
          %v1317 = vsub.f32 %v1297, %v1309
          %v1318 = vsub.f32 %v1298, %v1309
          %v1319 = vmul.f32 %v1221, %v1311
          %v1320 = vmul.f32 %v1228, %v1312
          %v1321 = vmul.f32 %v1235, %v1313
          %v1322 = vmul.f32 %v1242, %v1314
          %v1323 = vmul.f32 %v1249, %v1315
          %v1324 = vmul.f32 %v1256, %v1316
          %v1325 = vmul.f32 %v1263, %v1317
          %v1326 = vmul.f32 %v1270, %v1318
          %v1327 = vadd.f32 %v1319, %v1167
          %v1328 = vadd.f32 %v1320, %v1168
          %v1329 = vadd.f32 %v1321, %v1169
          %v1330 = vadd.f32 %v1322, %v1170
          %v1331 = vadd.f32 %v1323, %v1171
          %v1332 = vadd.f32 %v1324, %v1172
          %v1333 = vadd.f32 %v1325, %v1173
          %v1334 = vadd.f32 %v1326, %v1174
          %1335 = vst [vmem:[%s506] sm:$0xff] %v1327
          %1336 = vst [vmem:[%s506 + $0x8] sm:$0xff] %v1328
          %1337 = vst [vmem:[%s506 + $0x10] sm:$0xff] %v1329
          %1338 = vst [vmem:[%s506 + $0x18] sm:$0xff] %v1330
          %1339 = vst [vmem:[%s506 + $0x20] sm:$0xff] %v1331
          %1340 = vst [vmem:[%s506 + $0x28] sm:$0xff] %v1332
          %1341 = vst [vmem:[%s506 + $0x30] sm:$0xff] %v1333
          %1342 = vst [vmem:[%s506 + $0x38] sm:$0xff] %v1334
        $region84: #{adaattn_forward.1} parent=47 // pred_fallthru
          _
        %s1343 = sand.u32 %s232, 1
        %s1344 = scalar_lea.sflag [#allocation5], %s1343
        %s1345 = sand.u32 %s232, 1
        %s1346 = smul.addr %s1345, 64
        %s1347 = scalar_lea.vmem [#allocation13], %s1346
        // Predicated region
        $region85: #{adaattn_forward.1} parent=47 // pred_check
          %p1348 = pneg %p242
        $region86: #{adaattn_forward.1} parent=47 // pred_check_branch
          %1350 = sbr.rel (%p1348) target = $region88
        $region87: #{adaattn_forward.1} parent=47 // pred_region
          %s1351 = smul.u32 4, %s29
          %s1353 = ssub.s32 1024, 1024
          %1354 = vsyncadd %s1344, %s1353
          %s1355 = smul.addr %s28, 16
          %s1356 = sadd.s32 %s1351, %s1355
          %s1357 = smul.addr %s1356, 128
          %s1358 = scalar_lea.hbm %s7, %s1357
          %s1359 = sshll.u32 %s1347, 4
          %s1360 = int_to_ptr.vmem [resolvable:$true] %s1359
          %1365 = dma.vmem_to_hbm [thread:$0]  %s1360, 1024, %s1358, %s1344, 512, 1024, 32
        $region88: #{adaattn_forward.1} parent=47 // pred_fallthru
          _
      $region48: #{adaattn_forward.1} parent=5 // pred_fallthru
        _
      %p1366 = scmp.le.s32.totalorder 2, %s18
      // Predicated region
      $region89: #{adaattn_forward.1} parent=5 // pred_check
        %p1367 = pneg %p1366
      $region90: #{adaattn_forward.1} parent=5 // pred_check_branch
        %1369 = sbr.rel (%p1367) target = $region92
      $region91: #{adaattn_forward.1} parent=5 // pred_region
        %s1370 = ssub.s32 %s18, 2
        // Predicated region
        $region93: #{adaattn_forward.1} parent=91 // pred_check
          %p1371 = pneg %p248
        $region94: #{adaattn_forward.1} parent=91 // pred_check_branch
          %1373 = sbr.rel (%p1371) target = $region96
        $region95: #{adaattn_forward.1} parent=91 // pred_region
          %s1374 = sand.u32 %s233, 1
          %s1375 = scalar_lea.sflag [#allocation5], %s1374
          %s1376 = sand.u32 %s233, 1
          %s1377 = smul.addr %s1376, 64
          %s1378 = scalar_lea.vmem [#allocation13], %s1377
          %1379 = dma.done %s1375, 1024
        $region96: #{adaattn_forward.1} parent=91 // pred_fallthru
          _
      $region92: #{adaattn_forward.1} parent=5 // pred_fallthru
        _
    $region6: #{adaattn_forward.1} parent=1 // loop_footer
      %s22 = sadd.s32 1, %s18
    $region7: #{adaattn_forward.1} parent=1 // loop_footer_branch
      %17 = sbr.rel target = $region3
    $region8: #{adaattn_forward.1} parent=1 // loop_exit
      _
    %1380 = vsyncpa [#allocation4], 1
    %s1381 = scalar_lea.sflag [#allocation4], 1
    %1382 = vsyncpa %s1381, 1
    %1383 = vsyncpa [#allocation7], 1
    %1384 = vsyncpa [#allocation5], 1
    %s1385 = scalar_lea.sflag [#allocation5], 1
    %1386 = vsyncpa %s1385, 1

</llo_original>
